<compile_context>
chip_gen: v5e
topology: v5e:2x2
jax: 0.10.0
libtpu: 0.0.40
codegen_flags: <defaults>
</compile_context>

<pallas_src>
import math
import functools

import jax
import jax.numpy as jnp
from jax.experimental import pallas as pl
from jax.experimental.pallas import tpu as pltpu


CFG = dict(vocab=100, hidden=32, n_layers=2, n_heads=2, head_dim=16,
           intermediate=64, max_pos=16, type_vocab=2, num_labels=4)
NL_PAD = 128   # lane-dense classifier slab width (sliced back to num_labels outside)


# --------------------------------------------------------------------------
# Fused kernel (runs once per batch element; grid axis is "parallel")
# --------------------------------------------------------------------------
def _layer_norm(x, g, b, eps=1e-12):
    mu = jnp.mean(x, axis=-1, keepdims=True)
    var = jnp.mean((x - mu) ** 2, axis=-1, keepdims=True)
    return (x - mu) * jax.lax.rsqrt(var + eps) * g + b


def _gelu_tanh(x):
    # TODO(synk): HF BERT default is exact-erf GELU; tanh approx keeps the math
    # on the EUP (no erf lowering assumed in Mosaic) and matches to ~1e-3.
    return 0.5 * x * (1.0 + jnp.tanh(0.7978845608028654 * (x + 0.044715 * x * x * x)))


def _fused_model_kernel(
        emb_ref, mask_ref, labels_ref,
        emb_ln_g_ref, emb_ln_b_ref,
        wqkv_ref, bqkv_ref, wo_ref, bo_ref, ln1_g_ref, ln1_b_ref,
        wi_ref, bi_ref, wo2_ref, bo2_ref, ln2_g_ref, ln2_b_ref,
        clsw_ref, clsb_ref,
        logits_ref, loss_ref,
        *, S, nH, Dh, n_layers, num_labels, compute_loss):
    H = nH * Dh
    scale = 1.0 / math.sqrt(Dh)
    bf16 = jnp.bfloat16
    f32 = jnp.float32

    # ---- embedding LayerNorm (per-token, f32) ----
    h = _layer_norm(emb_ref[...], emb_ln_g_ref[...], emb_ln_b_ref[...])        # (S, H)

    # additive attention-mask bias: (1, 1, S) broadcasts over (nH, S_q, S_k)
    bias = ((1.0 - mask_ref[...]) * -1e9)[None]

    # ---- transformer encoder layers (all activations stay in VMEM/vregs) ----
    for l in range(n_layers):
        wqkv = wqkv_ref[l]        # (3, nH, H, Dh) bf16
        bqkv = bqkv_ref[l]        # (3, nH, 1, Dh) f32

        # Heads on the leading batch dim -> batched einsums (flash-attn style),
        # no lane slices / transposes / concatenates.
        h_b = jnp.broadcast_to(h.astype(bf16)[None], (nH, S, H))               # (nH, S, H)
        q = jnp.einsum('hsk,hkd->hsd', h_b, wqkv[0],
                       preferred_element_type=f32) + bqkv[0]                   # (nH, S, Dh)
        k = jnp.einsum('hsk,hkd->hsd', h_b, wqkv[1],
                       preferred_element_type=f32) + bqkv[1]
        v = jnp.einsum('hsk,hkd->hsd', h_b, wqkv[2],
                       preferred_element_type=f32) + bqkv[2]

        s = jnp.einsum('hqd,hkd->hqk', q.astype(bf16), k.astype(bf16),
                       preferred_element_type=f32) * scale + bias              # (nH, S, S)
        s = s - jnp.max(s, axis=-1, keepdims=True)
        p = jnp.exp(s)
        p = p * pl.reciprocal(jnp.sum(p, axis=-1, keepdims=True), approx=True)

        ctx = jnp.einsum('hqk,hkd->hqd', p.astype(bf16), v.astype(bf16),
                         preferred_element_type=f32)                           # (nH, S, Dh)

        # output projection: per-head matmul + head-sum  ==  concat(ctx) @ W_o
        attn = jnp.sum(
            jnp.einsum('hsd,hdo->hso', ctx.astype(bf16), wo_ref[l],
                       preferred_element_type=f32), axis=0) + bo_ref[l]        # (S, H)
        h = _layer_norm(attn + h, ln1_g_ref[l], ln1_b_ref[l])

        # FFN with GELU + residual + LayerNorm (fused epilogue)
        ffn = jnp.dot(h.astype(bf16), wi_ref[l],
                      preferred_element_type=f32) + bi_ref[l]                  # (S, I)
        ffn = _gelu_tanh(ffn)
        ffn = jnp.dot(ffn.astype(bf16), wo2_ref[l],
                      preferred_element_type=f32) + bo2_ref[l]                 # (S, H)
        h = _layer_norm(ffn + h, ln2_g_ref[l], ln2_b_ref[l])

    # ---- CLS pooling (row 0) + lane-dense classifier head ----
    cls = h[0:1, :]                                                            # (1, H)
    logits = jnp.dot(cls.astype(bf16), clsw_ref[...],
                     preferred_element_type=f32) + clsb_ref[...]               # (1, NL_PAD)
    logits_ref[...] = logits

    # ---- fused BCEWithLogits (partial sum for this batch row) ----
    if compute_loss:
        x = logits
        y = labels_ref[...]
        # TODO(synk): log1p(exp(-|x|)) would be slightly more accurate; kept as
        # log(1+exp) to stay on guaranteed Mosaic lowerings.
        elem = jnp.maximum(x, 0.0) - x * y + jnp.log(1.0 + jnp.exp(-jnp.abs(x)))
        col = jax.lax.broadcasted_iota(jnp.int32, x.shape, 1)
        elem = jnp.where(col < num_labels, elem, 0.0)
        loss_ref[...] = jnp.sum(elem, axis=-1, keepdims=True)                  # (1, 1)
    else:
        loss_ref[...] = jnp.zeros_like(loss_ref)


# --------------------------------------------------------------------------
# Parameters (deterministic in-script init; torch nn.Linear layout = W^T)
# --------------------------------------------------------------------------
def init_params(key, cfg):
    H, I = cfg["hidden"], cfg["intermediate"]
    ks = iter(jax.random.split(key, 64))
    n = lambda shape: 0.02 * jax.random.normal(next(ks), shape, jnp.float32)
    p = {
        "word_emb": n((cfg["vocab"], H)),
        "pos_emb": n((cfg["max_pos"], H)),
        "type_emb": n((cfg["type_vocab"], H)),
        "emb_ln_g": jnp.ones((H,), jnp.float32),
        "emb_ln_b": jnp.zeros((H,), jnp.float32),
        "layers": [],
        "cls_w": n((H, cfg["num_labels"])),
        "cls_b": jnp.zeros((cfg["num_labels"],), jnp.float32),
    }
    for _ in range(cfg["n_layers"]):
        p["layers"].append({
            "wq": n((H, H)), "bq": jnp.zeros((H,), jnp.float32),
            "wk": n((H, H)), "bk": jnp.zeros((H,), jnp.float32),
            "wv": n((H, H)), "bv": jnp.zeros((H,), jnp.float32),
            "wo": n((H, H)), "bo": jnp.zeros((H,), jnp.float32),
            "ln1_g": jnp.ones((H,), jnp.float32), "ln1_b": jnp.zeros((H,), jnp.float32),
            "wi": n((H, I)), "bi": jnp.zeros((I,), jnp.float32),
            "wo2": n((I, H)), "bo2": jnp.zeros((H,), jnp.float32),
            "ln2_g": jnp.ones((H,), jnp.float32), "ln2_b": jnp.zeros((H,), jnp.float32),
        })
    return p


def _pack_params(params, cfg):
    """Per-head weight packing (heads on a leading dim), bf16 matmul weights,
    lane-dense classifier slab."""
    H, nH, Dh = cfg["hidden"], cfg["n_heads"], cfg["head_dim"]
    nl = cfg["num_labels"]
    layers = params["layers"]
    bf16 = jnp.bfloat16
    row = lambda v: v[None, :]

    def split_w(w):   # (H, H): output columns per head -> (nH, H, Dh)
        return w.reshape(H, nH, Dh).transpose(1, 0, 2)

    def split_b(b):   # (H,) -> (nH, 1, Dh)
        return b.reshape(nH, Dh)[:, None, :]

    pk = dict(
        emb_ln_g=row(params["emb_ln_g"]),
        emb_ln_b=row(params["emb_ln_b"]),
        wqkv=jnp.stack([jnp.stack([split_w(l["wq"]), split_w(l["wk"]), split_w(l["wv"])])
                        for l in layers]).astype(bf16),                 # (L, 3, nH, H, Dh)
        bqkv=jnp.stack([jnp.stack([split_b(l["bq"]), split_b(l["bk"]), split_b(l["bv"])])
                        for l in layers]),                              # (L, 3, nH, 1, Dh)
        wo=jnp.stack([l["wo"].reshape(nH, Dh, H) for l in layers]).astype(bf16),
        bo=jnp.stack([row(l["bo"]) for l in layers]),
        ln1_g=jnp.stack([row(l["ln1_g"]) for l in layers]),
        ln1_b=jnp.stack([row(l["ln1_b"]) for l in layers]),
        wi=jnp.stack([l["wi"] for l in layers]).astype(bf16),
        bi=jnp.stack([row(l["bi"]) for l in layers]),
        wo2=jnp.stack([l["wo2"] for l in layers]).astype(bf16),
        bo2=jnp.stack([row(l["bo2"]) for l in layers]),
        ln2_g=jnp.stack([row(l["ln2_g"]) for l in layers]),
        ln2_b=jnp.stack([row(l["ln2_b"]) for l in layers]),
        cls_w=jnp.pad(params["cls_w"], ((0, 0), (0, NL_PAD - nl))).astype(bf16),
        cls_b=jnp.pad(params["cls_b"], (0, NL_PAD - nl))[None, :],
    )
    return pk


# --------------------------------------------------------------------------
# Forward pass
# --------------------------------------------------------------------------
def forward(params, input_ids, attention_mask, token_type_ids=None, labels=None):
    cfg = CFG
    B, S = input_ids.shape
    H, nH, Dh = cfg["hidden"], cfg["n_heads"], cfg["head_dim"]
    nl = cfg["num_labels"]

    if token_type_ids is None:
        token_type_ids = jnp.zeros_like(input_ids)

    # Embedding table gathers stay in XLA (glue).
    # TODO(synk): at real sizes, fuse this gather via PrefetchScalarGridSpec +
    # pl.Element row index_map to remove the B*S*H HBM round trip.
    emb = (params["word_emb"][input_ids]
           + params["pos_emb"][jnp.arange(S)][None, :, :]
           + params["type_emb"][token_type_ids]).astype(jnp.float32)           # (B, S, H)

    mask = attention_mask.astype(jnp.float32).reshape(B, 1, S)
    compute_loss = labels is not None
    if compute_loss:
        labels_pad = jnp.pad(labels.astype(jnp.float32),
                             ((0, 0), (0, NL_PAD - nl))).reshape(B, 1, NL_PAD)
    else:
        labels_pad = jnp.zeros((B, 1, NL_PAD), jnp.float32)

    pk = _pack_params(params, cfg)

    kern = functools.partial(
        _fused_model_kernel, S=S, nH=nH, Dh=Dh, n_layers=cfg["n_layers"],
        num_labels=nl, compute_loss=compute_loss)

    def full(w):
        nd = w.ndim
        # whole array VMEM-resident; same block every grid step -> no re-DMA
        return pl.BlockSpec(w.shape, lambda b: (0,) * nd)

    weight_order = ("emb_ln_g", "emb_ln_b", "wqkv", "bqkv", "wo", "bo",
                    "ln1_g", "ln1_b", "wi", "bi", "wo2", "bo2",
                    "ln2_g", "ln2_b", "cls_w", "cls_b")

    in_specs = [
        pl.BlockSpec((None, S, H), lambda b: (b, 0, 0)),          # emb
        pl.BlockSpec((None, 1, S), lambda b: (b, 0, 0)),          # mask
        pl.BlockSpec((None, 1, NL_PAD), lambda b: (b, 0, 0)),     # labels
    ] + [full(pk[k]) for k in weight_order]

    out_specs = (pl.BlockSpec((None, 1, NL_PAD), lambda b: (b, 0, 0)),
                 pl.BlockSpec((None, 1, 1), lambda b: (b, 0, 0)))

    logits_pad, loss_parts = pl.pallas_call(
        kern,
        grid=(B,),
        in_specs=in_specs,
        out_specs=out_specs,
        out_shape=(jax.ShapeDtypeStruct((B, 1, NL_PAD), jnp.float32),
                   jax.ShapeDtypeStruct((B, 1, 1), jnp.float32)),
        compiler_params=pltpu.CompilerParams(
            dimension_semantics=("parallel",),          # both TCs on v7x
            vmem_limit_bytes=32 * 1024 * 1024),         # actual usage < 1 MiB
    )(emb, mask, labels_pad, *[pk[k] for k in weight_order])

    output = {"logits": logits_pad[:, 0, :nl]}
    if compute_loss:
        output["loss"] = jnp.sum(loss_parts) / (B * nl)   # BCEWithLogits 'mean'
    return output


# --------------------------------------------------------------------------
if __name__ == "__main__":
    key = jax.random.PRNGKey(0)
    k_param, k_ids, k_lab = jax.random.split(key, 3)

    B, S = 2, 8
    params = init_params(k_param, CFG)

    input_ids = jax.random.randint(k_ids, (B, S), 0, CFG["vocab"], dtype=jnp.int32)
    attention_mask = jnp.array(
        [[1, 1, 1, 1, 1, 1, 1, 1],
         [1, 1, 1, 1, 1, 0, 0, 0]], dtype=jnp.float32)
    token_type_ids = jnp.zeros((B, S), dtype=jnp.int32)
    labels = (jax.random.uniform(k_lab, (B, CFG["num_labels"])) > 0.5).astype(jnp.float32)

    out = forward(params, input_ids, attention_mask, token_type_ids, labels)
    jax.block_until_ready(out)

    assert out["logits"].shape == (B, CFG["num_labels"])
    assert out["loss"].shape == ()
    assert bool(jnp.isfinite(out["loss"]))
    print("KERNEL_OK")
</pallas_src>

<mosaic_0001>
module attributes {stable_mosaic.version = 11 : i64} {
  func.func @_fused_model_kernel(%arg0: i32, %arg1: memref<1x8x32xf32, #tpu.memory_space<vmem>>, %arg2: memref<1x1x8xf32, #tpu.memory_space<vmem>>, %arg3: memref<1x1x128xf32, #tpu.memory_space<vmem>>, %arg4: memref<1x32xf32, #tpu.memory_space<vmem>>, %arg5: memref<1x32xf32, #tpu.memory_space<vmem>>, %arg6: memref<2x3x2x32x16xbf16, #tpu.memory_space<vmem>>, %arg7: memref<2x3x2x1x16xf32, #tpu.memory_space<vmem>>, %arg8: memref<2x2x16x32xbf16, #tpu.memory_space<vmem>>, %arg9: memref<2x1x32xf32, #tpu.memory_space<vmem>>, %arg10: memref<2x1x32xf32, #tpu.memory_space<vmem>>, %arg11: memref<2x1x32xf32, #tpu.memory_space<vmem>>, %arg12: memref<2x32x64xbf16, #tpu.memory_space<vmem>>, %arg13: memref<2x1x64xf32, #tpu.memory_space<vmem>>, %arg14: memref<2x64x32xbf16, #tpu.memory_space<vmem>>, %arg15: memref<2x1x32xf32, #tpu.memory_space<vmem>>, %arg16: memref<2x1x32xf32, #tpu.memory_space<vmem>>, %arg17: memref<2x1x32xf32, #tpu.memory_space<vmem>>, %arg18: memref<32x128xbf16, #tpu.memory_space<vmem>>, %arg19: memref<1x128xf32, #tpu.memory_space<vmem>>, %arg20: memref<1x1x128xf32, #tpu.memory_space<vmem>>, %arg21: memref<1x1x1xf32, #tpu.memory_space<vmem>>) attributes {dimension_semantics = [#tpu.dimension_semantics<parallel>], iteration_bounds = array<i64: 2>, scalar_prefetch = 0 : i64, scratch_operands = 0 : i64, tpu.core_type = #tpu.core_type<tc>, window_params = [{transform_indices = @transform_0, window_bounds = array<i64: 1, 8, 32>}, {transform_indices = @transform_1, window_bounds = array<i64: 1, 1, 8>}, {transform_indices = @transform_2, window_bounds = array<i64: 1, 1, 128>}, {pipeline_mode = #tpu.pipeline_mode<synchronous>, transform_indices = @transform_3, window_bounds = array<i64: 1, 32>}, {pipeline_mode = #tpu.pipeline_mode<synchronous>, transform_indices = @transform_4, window_bounds = array<i64: 1, 32>}, {pipeline_mode = #tpu.pipeline_mode<synchronous>, transform_indices = @transform_5, window_bounds = array<i64: 2, 3, 2, 32, 16>}, {pipeline_mode = #tpu.pipeline_mode<synchronous>, transform_indices = @transform_6, window_bounds = array<i64: 2, 3, 2, 1, 16>}, {pipeline_mode = #tpu.pipeline_mode<synchronous>, transform_indices = @transform_7, window_bounds = array<i64: 2, 2, 16, 32>}, {pipeline_mode = #tpu.pipeline_mode<synchronous>, transform_indices = @transform_8, window_bounds = array<i64: 2, 1, 32>}, {pipeline_mode = #tpu.pipeline_mode<synchronous>, transform_indices = @transform_9, window_bounds = array<i64: 2, 1, 32>}, {pipeline_mode = #tpu.pipeline_mode<synchronous>, transform_indices = @transform_10, window_bounds = array<i64: 2, 1, 32>}, {pipeline_mode = #tpu.pipeline_mode<synchronous>, transform_indices = @transform_11, window_bounds = array<i64: 2, 32, 64>}, {pipeline_mode = #tpu.pipeline_mode<synchronous>, transform_indices = @transform_12, window_bounds = array<i64: 2, 1, 64>}, {pipeline_mode = #tpu.pipeline_mode<synchronous>, transform_indices = @transform_13, window_bounds = array<i64: 2, 64, 32>}, {pipeline_mode = #tpu.pipeline_mode<synchronous>, transform_indices = @transform_14, window_bounds = array<i64: 2, 1, 32>}, {pipeline_mode = #tpu.pipeline_mode<synchronous>, transform_indices = @transform_15, window_bounds = array<i64: 2, 1, 32>}, {pipeline_mode = #tpu.pipeline_mode<synchronous>, transform_indices = @transform_16, window_bounds = array<i64: 2, 1, 32>}, {pipeline_mode = #tpu.pipeline_mode<synchronous>, transform_indices = @transform_17, window_bounds = array<i64: 32, 128>}, {pipeline_mode = #tpu.pipeline_mode<synchronous>, transform_indices = @transform_18, window_bounds = array<i64: 1, 128>}, {transform_indices = @transform_19, window_bounds = array<i64: 1, 1, 128>}, {transform_indices = @transform_20, window_bounds = array<i64: 1, 1, 1>}]} {
    %c0 = arith.constant 0 : index
    %c0_0 = arith.constant 0 : index
    %c0_1 = arith.constant 0 : index
    %0 = vector.load %arg1[%c0, %c0_0, %c0_1] : memref<1x8x32xf32, #tpu.memory_space<vmem>>, vector<1x8x32xf32>
    %1 = vector.shape_cast %0 : vector<1x8x32xf32> to vector<8x32xf32>
    %c0_2 = arith.constant 0 : index
    %c0_3 = arith.constant 0 : index
    %2 = vector.load %arg4[%c0_2, %c0_3] : memref<1x32xf32, #tpu.memory_space<vmem>>, vector<1x32xf32>
    %c0_4 = arith.constant 0 : index
    %c0_5 = arith.constant 0 : index
    %3 = vector.load %arg5[%c0_4, %c0_5] : memref<1x32xf32, #tpu.memory_space<vmem>>, vector<1x32xf32>
    %cst = arith.constant dense<0.000000e+00> : vector<8xf32>
    %4 = vector.multi_reduction <add>, %1, %cst [1] : vector<8x32xf32> to vector<8xf32>
    %5 = vector.shape_cast %4 : vector<8xf32> to vector<8x1xf32>
    %cst_6 = arith.constant 3.200000e+01 : f32
    %6 = vector.broadcast %cst_6 : f32 to vector<8x1xf32>
    %7 = arith.divf %5, %6 : vector<8x1xf32>
    %8 = vector.broadcast %7 : vector<8x1xf32> to vector<8x32xf32>
    %9 = arith.subf %1, %8 : vector<8x32xf32>
    %10 = arith.mulf %9, %9 : vector<8x32xf32>
    %cst_7 = arith.constant dense<0.000000e+00> : vector<8xf32>
    %11 = vector.multi_reduction <add>, %10, %cst_7 [1] : vector<8x32xf32> to vector<8xf32>
    %12 = vector.shape_cast %11 : vector<8xf32> to vector<8x1xf32>
    %cst_8 = arith.constant 3.200000e+01 : f32
    %13 = vector.broadcast %cst_8 : f32 to vector<8x1xf32>
    %14 = arith.divf %12, %13 : vector<8x1xf32>
    %15 = vector.broadcast %7 : vector<8x1xf32> to vector<8x32xf32>
    %16 = arith.subf %1, %15 : vector<8x32xf32>
    %cst_9 = arith.constant 9.99999996E-13 : f32
    %17 = vector.broadcast %cst_9 : f32 to vector<8x1xf32>
    %18 = arith.addf %14, %17 : vector<8x1xf32>
    %19 = math.rsqrt %18 : vector<8x1xf32>
    %20 = vector.broadcast %19 : vector<8x1xf32> to vector<8x32xf32>
    %21 = arith.mulf %16, %20 : vector<8x32xf32>
    %22 = vector.broadcast %2 : vector<1x32xf32> to vector<8x32xf32>
    %23 = arith.mulf %21, %22 : vector<8x32xf32>
    %24 = vector.broadcast %3 : vector<1x32xf32> to vector<8x32xf32>
    %25 = arith.addf %23, %24 : vector<8x32xf32>
    %c0_10 = arith.constant 0 : index
    %c0_11 = arith.constant 0 : index
    %c0_12 = arith.constant 0 : index
    %26 = vector.load %arg2[%c0_10, %c0_11, %c0_12] : memref<1x1x8xf32, #tpu.memory_space<vmem>>, vector<1x1x8xf32>
    %27 = vector.shape_cast %26 : vector<1x1x8xf32> to vector<1x8xf32>
    %cst_13 = arith.constant 1.000000e+00 : f32
    %28 = vector.broadcast %cst_13 : f32 to vector<1x8xf32>
    %29 = arith.subf %28, %27 : vector<1x8xf32>
    %cst_14 = arith.constant -1.000000e+09 : f32
    %30 = vector.broadcast %cst_14 : f32 to vector<1x8xf32>
    %31 = arith.mulf %29, %30 : vector<1x8xf32>
    %32 = vector.shape_cast %31 : vector<1x8xf32> to vector<1x1x8xf32>
    %c0_15 = arith.constant 0 : index
    %c0_16 = arith.constant 0 : index
    %c0_17 = arith.constant 0 : index
    %c0_18 = arith.constant 0 : index
    %c0_19 = arith.constant 0 : index
    %33 = vector.load %arg6[%c0_15, %c0_16, %c0_17, %c0_18, %c0_19] : memref<2x3x2x32x16xbf16, #tpu.memory_space<vmem>>, vector<1x3x2x32x16xbf16>
    %34 = vector.shape_cast %33 : vector<1x3x2x32x16xbf16> to vector<3x2x32x16xbf16>
    %c0_20 = arith.constant 0 : index
    %c0_21 = arith.constant 0 : index
    %c0_22 = arith.constant 0 : index
    %c0_23 = arith.constant 0 : index
    %c0_24 = arith.constant 0 : index
    %35 = vector.load %arg7[%c0_20, %c0_21, %c0_22, %c0_23, %c0_24] : memref<2x3x2x1x16xf32, #tpu.memory_space<vmem>>, vector<1x3x2x1x16xf32>
    %36 = vector.shape_cast %35 : vector<1x3x2x1x16xf32> to vector<3x2x1x16xf32>
    %37 = arith.truncf %25 : vector<8x32xf32> to vector<8x32xbf16>
    %38 = vector.shape_cast %37 : vector<8x32xbf16> to vector<1x8x32xbf16>
    %39 = vector.shape_cast %38 : vector<1x8x32xbf16> to vector<1x8x32xbf16>
    %40 = vector.broadcast %39 : vector<1x8x32xbf16> to vector<2x8x32xbf16>
    %41 = vector.extract_strided_slice %34 {offsets = [0, 0, 0, 0], sizes = [1, 2, 32, 16], strides = [1, 1, 1, 1]} : vector<3x2x32x16xbf16> to vector<1x2x32x16xbf16>
    %42 = vector.shape_cast %41 : vector<1x2x32x16xbf16> to vector<2x32x16xbf16>
    "tpu.trace_start"() <{level = 10 : i32, message = "hsk,hkd->hsd"}> : () -> ()
    %cst_25 = arith.constant dense<0.000000e+00> : vector<2x8x16xf32>
    %43 = tpu.matmul %40, %42, %cst_25 {dimension_numbers = #tpu.dot_dimension_numbers<[2], [1], [1], [2], [0, 0, 0, 1, 1, 2], [0], [0]>} : vector<2x8x32xbf16>, vector<2x32x16xbf16>, vector<2x8x16xf32> -> vector<2x8x16xf32>
    "tpu.trace_stop"() : () -> ()
    %44 = vector.extract_strided_slice %36 {offsets = [0, 0, 0, 0], sizes = [1, 2, 1, 16], strides = [1, 1, 1, 1]} : vector<3x2x1x16xf32> to vector<1x2x1x16xf32>
    %45 = vector.shape_cast %44 : vector<1x2x1x16xf32> to vector<2x1x16xf32>
    %46 = vector.broadcast %45 : vector<2x1x16xf32> to vector<2x8x16xf32>
    %47 = arith.addf %43, %46 : vector<2x8x16xf32>
    %48 = vector.extract_strided_slice %34 {offsets = [1, 0, 0, 0], sizes = [1, 2, 32, 16], strides = [1, 1, 1, 1]} : vector<3x2x32x16xbf16> to vector<1x2x32x16xbf16>
    %49 = vector.shape_cast %48 : vector<1x2x32x16xbf16> to vector<2x32x16xbf16>
    "tpu.trace_start"() <{level = 10 : i32, message = "hsk,hkd->hsd"}> : () -> ()
    %cst_26 = arith.constant dense<0.000000e+00> : vector<2x8x16xf32>
    %50 = tpu.matmul %40, %49, %cst_26 {dimension_numbers = #tpu.dot_dimension_numbers<[2], [1], [1], [2], [0, 0, 0, 1, 1, 2], [0], [0]>} : vector<2x8x32xbf16>, vector<2x32x16xbf16>, vector<2x8x16xf32> -> vector<2x8x16xf32>
    "tpu.trace_stop"() : () -> ()
    %51 = vector.extract_strided_slice %36 {offsets = [1, 0, 0, 0], sizes = [1, 2, 1, 16], strides = [1, 1, 1, 1]} : vector<3x2x1x16xf32> to vector<1x2x1x16xf32>
    %52 = vector.shape_cast %51 : vector<1x2x1x16xf32> to vector<2x1x16xf32>
    %53 = vector.broadcast %52 : vector<2x1x16xf32> to vector<2x8x16xf32>
    %54 = arith.addf %50, %53 : vector<2x8x16xf32>
    %55 = vector.extract_strided_slice %34 {offsets = [2, 0, 0, 0], sizes = [1, 2, 32, 16], strides = [1, 1, 1, 1]} : vector<3x2x32x16xbf16> to vector<1x2x32x16xbf16>
    %56 = vector.shape_cast %55 : vector<1x2x32x16xbf16> to vector<2x32x16xbf16>
    "tpu.trace_start"() <{level = 10 : i32, message = "hsk,hkd->hsd"}> : () -> ()
    %cst_27 = arith.constant dense<0.000000e+00> : vector<2x8x16xf32>
    %57 = tpu.matmul %40, %56, %cst_27 {dimension_numbers = #tpu.dot_dimension_numbers<[2], [1], [1], [2], [0, 0, 0, 1, 1, 2], [0], [0]>} : vector<2x8x32xbf16>, vector<2x32x16xbf16>, vector<2x8x16xf32> -> vector<2x8x16xf32>
    "tpu.trace_stop"() : () -> ()
    %58 = vector.extract_strided_slice %36 {offsets = [2, 0, 0, 0], sizes = [1, 2, 1, 16], strides = [1, 1, 1, 1]} : vector<3x2x1x16xf32> to vector<1x2x1x16xf32>
    %59 = vector.shape_cast %58 : vector<1x2x1x16xf32> to vector<2x1x16xf32>
    %60 = vector.broadcast %59 : vector<2x1x16xf32> to vector<2x8x16xf32>
    %61 = arith.addf %57, %60 : vector<2x8x16xf32>
    %62 = arith.truncf %47 : vector<2x8x16xf32> to vector<2x8x16xbf16>
    %63 = arith.truncf %54 : vector<2x8x16xf32> to vector<2x8x16xbf16>
    "tpu.trace_start"() <{level = 10 : i32, message = "hqd,hkd->hqk"}> : () -> ()
    %cst_28 = arith.constant dense<0.000000e+00> : vector<2x8x8xf32>
    %64 = tpu.matmul %62, %63, %cst_28 {dimension_numbers = #tpu.dot_dimension_numbers<[2], [2], [1], [1], [0, 0, 0, 1, 1, 1], [0], [0]>} : vector<2x8x16xbf16>, vector<2x8x16xbf16>, vector<2x8x8xf32> -> vector<2x8x8xf32>
    "tpu.trace_stop"() : () -> ()
    %cst_29 = arith.constant 2.500000e-01 : f32
    %65 = vector.broadcast %cst_29 : f32 to vector<2x8x8xf32>
    %66 = arith.mulf %64, %65 : vector<2x8x8xf32>
    %67 = vector.broadcast %32 : vector<1x1x8xf32> to vector<2x8x8xf32>
    %68 = arith.addf %66, %67 : vector<2x8x8xf32>
    %cst_30 = arith.constant dense<0xFF800000> : vector<2x8xf32>
    %69 = vector.multi_reduction <maximumf>, %68, %cst_30 [2] : vector<2x8x8xf32> to vector<2x8xf32>
    %70 = vector.shape_cast %69 : vector<2x8xf32> to vector<2x8x1xf32>
    %71 = vector.broadcast %70 : vector<2x8x1xf32> to vector<2x8x8xf32>
    %72 = arith.subf %68, %71 : vector<2x8x8xf32>
    %73 = math.exp %72 : vector<2x8x8xf32>
    %cst_31 = arith.constant dense<0.000000e+00> : vector<2x8xf32>
    %74 = vector.multi_reduction <add>, %73, %cst_31 [2] : vector<2x8x8xf32> to vector<2x8xf32>
    %75 = vector.shape_cast %74 : vector<2x8xf32> to vector<2x8x1xf32>
    %76 = tpu.reciprocal %75 {approx = true} : vector<2x8x1xf32> -> vector<2x8x1xf32>
    %77 = vector.broadcast %76 : vector<2x8x1xf32> to vector<2x8x8xf32>
    %78 = arith.mulf %73, %77 : vector<2x8x8xf32>
    %79 = arith.truncf %78 : vector<2x8x8xf32> to vector<2x8x8xbf16>
    %80 = arith.truncf %61 : vector<2x8x16xf32> to vector<2x8x16xbf16>
    "tpu.trace_start"() <{level = 10 : i32, message = "hqk,hkd->hqd"}> : () -> ()
    %cst_32 = arith.constant dense<0.000000e+00> : vector<2x8x16xf32>
    %81 = tpu.matmul %79, %80, %cst_32 {dimension_numbers = #tpu.dot_dimension_numbers<[2], [1], [1], [2], [0, 0, 0, 1, 1, 2], [0], [0]>} : vector<2x8x8xbf16>, vector<2x8x16xbf16>, vector<2x8x16xf32> -> vector<2x8x16xf32>
    "tpu.trace_stop"() : () -> ()
    %82 = arith.truncf %81 : vector<2x8x16xf32> to vector<2x8x16xbf16>
    %c0_33 = arith.constant 0 : index
    %c0_34 = arith.constant 0 : index
    %c0_35 = arith.constant 0 : index
    %c0_36 = arith.constant 0 : index
    %83 = vector.load %arg8[%c0_33, %c0_34, %c0_35, %c0_36] : memref<2x2x16x32xbf16, #tpu.memory_space<vmem>>, vector<1x2x16x32xbf16>
    %84 = vector.shape_cast %83 : vector<1x2x16x32xbf16> to vector<2x16x32xbf16>
    "tpu.trace_start"() <{level = 10 : i32, message = "hsd,hdo->hso"}> : () -> ()
    %cst_37 = arith.constant dense<0.000000e+00> : vector<2x8x32xf32>
    %85 = tpu.matmul %82, %84, %cst_37 {dimension_numbers = #tpu.dot_dimension_numbers<[2], [1], [1], [2], [0, 0, 0, 1, 1, 2], [0], [0]>} : vector<2x8x16xbf16>, vector<2x16x32xbf16>, vector<2x8x32xf32> -> vector<2x8x32xf32>
    "tpu.trace_stop"() : () -> ()
    %cst_38 = arith.constant dense<0.000000e+00> : vector<8x32xf32>
    %86 = vector.multi_reduction <add>, %85, %cst_38 [0] : vector<2x8x32xf32> to vector<8x32xf32>
    %c0_39 = arith.constant 0 : index
    %c0_40 = arith.constant 0 : index
    %c0_41 = arith.constant 0 : index
    %87 = vector.load %arg9[%c0_39, %c0_40, %c0_41] : memref<2x1x32xf32, #tpu.memory_space<vmem>>, vector<1x1x32xf32>
    %88 = vector.shape_cast %87 : vector<1x1x32xf32> to vector<1x32xf32>
    %89 = vector.broadcast %88 : vector<1x32xf32> to vector<8x32xf32>
    %90 = arith.addf %86, %89 : vector<8x32xf32>
    %91 = arith.addf %90, %25 : vector<8x32xf32>
    %c0_42 = arith.constant 0 : index
    %c0_43 = arith.constant 0 : index
    %c0_44 = arith.constant 0 : index
    %92 = vector.load %arg10[%c0_42, %c0_43, %c0_44] : memref<2x1x32xf32, #tpu.memory_space<vmem>>, vector<1x1x32xf32>
    %93 = vector.shape_cast %92 : vector<1x1x32xf32> to vector<1x32xf32>
    %c0_45 = arith.constant 0 : index
    %c0_46 = arith.constant 0 : index
    %c0_47 = arith.constant 0 : index
    %94 = vector.load %arg11[%c0_45, %c0_46, %c0_47] : memref<2x1x32xf32, #tpu.memory_space<vmem>>, vector<1x1x32xf32>
    %95 = vector.shape_cast %94 : vector<1x1x32xf32> to vector<1x32xf32>
    %cst_48 = arith.constant dense<0.000000e+00> : vector<8xf32>
    %96 = vector.multi_reduction <add>, %91, %cst_48 [1] : vector<8x32xf32> to vector<8xf32>
    %97 = vector.shape_cast %96 : vector<8xf32> to vector<8x1xf32>
    %cst_49 = arith.constant 3.200000e+01 : f32
    %98 = vector.broadcast %cst_49 : f32 to vector<8x1xf32>
    %99 = arith.divf %97, %98 : vector<8x1xf32>
    %100 = vector.broadcast %99 : vector<8x1xf32> to vector<8x32xf32>
    %101 = arith.subf %91, %100 : vector<8x32xf32>
    %102 = arith.mulf %101, %101 : vector<8x32xf32>
    %cst_50 = arith.constant dense<0.000000e+00> : vector<8xf32>
    %103 = vector.multi_reduction <add>, %102, %cst_50 [1] : vector<8x32xf32> to vector<8xf32>
    %104 = vector.shape_cast %103 : vector<8xf32> to vector<8x1xf32>
    %cst_51 = arith.constant 3.200000e+01 : f32
    %105 = vector.broadcast %cst_51 : f32 to vector<8x1xf32>
    %106 = arith.divf %104, %105 : vector<8x1xf32>
    %107 = vector.broadcast %99 : vector<8x1xf32> to vector<8x32xf32>
    %108 = arith.subf %91, %107 : vector<8x32xf32>
    %cst_52 = arith.constant 9.99999996E-13 : f32
    %109 = vector.broadcast %cst_52 : f32 to vector<8x1xf32>
    %110 = arith.addf %106, %109 : vector<8x1xf32>
    %111 = math.rsqrt %110 : vector<8x1xf32>
    %112 = vector.broadcast %111 : vector<8x1xf32> to vector<8x32xf32>
    %113 = arith.mulf %108, %112 : vector<8x32xf32>
    %114 = vector.broadcast %93 : vector<1x32xf32> to vector<8x32xf32>
    %115 = arith.mulf %113, %114 : vector<8x32xf32>
    %116 = vector.broadcast %95 : vector<1x32xf32> to vector<8x32xf32>
    %117 = arith.addf %115, %116 : vector<8x32xf32>
    %118 = arith.truncf %117 : vector<8x32xf32> to vector<8x32xbf16>
    %c0_53 = arith.constant 0 : index
    %c0_54 = arith.constant 0 : index
    %c0_55 = arith.constant 0 : index
    %119 = vector.load %arg12[%c0_53, %c0_54, %c0_55] : memref<2x32x64xbf16, #tpu.memory_space<vmem>>, vector<1x32x64xbf16>
    %120 = vector.shape_cast %119 : vector<1x32x64xbf16> to vector<32x64xbf16>
    %cst_56 = arith.constant dense<0.000000e+00> : vector<8x64xf32>
    %121 = tpu.matmul %118, %120, %cst_56 {dimension_numbers = #tpu.dot_dimension_numbers<[1], [0], [0], [1], [0, 0, 1, 1], [], []>} : vector<8x32xbf16>, vector<32x64xbf16>, vector<8x64xf32> -> vector<8x64xf32>
    %c0_57 = arith.constant 0 : index
    %c0_58 = arith.constant 0 : index
    %c0_59 = arith.constant 0 : index
    %122 = vector.load %arg13[%c0_57, %c0_58, %c0_59] : memref<2x1x64xf32, #tpu.memory_space<vmem>>, vector<1x1x64xf32>
    %123 = vector.shape_cast %122 : vector<1x1x64xf32> to vector<1x64xf32>
    %124 = vector.broadcast %123 : vector<1x64xf32> to vector<8x64xf32>
    %125 = arith.addf %121, %124 : vector<8x64xf32>
    %cst_60 = arith.constant 5.000000e-01 : f32
    %126 = vector.broadcast %cst_60 : f32 to vector<8x64xf32>
    %127 = arith.mulf %126, %125 : vector<8x64xf32>
    %cst_61 = arith.constant 4.471500e-02 : f32
    %128 = vector.broadcast %cst_61 : f32 to vector<8x64xf32>
    %129 = arith.mulf %128, %125 : vector<8x64xf32>
    %130 = arith.mulf %129, %125 : vector<8x64xf32>
    %131 = arith.mulf %130, %125 : vector<8x64xf32>
    %132 = arith.addf %125, %131 : vector<8x64xf32>
    %cst_62 = arith.constant 0.797884583 : f32
    %133 = vector.broadcast %cst_62 : f32 to vector<8x64xf32>
    %134 = arith.mulf %133, %132 : vector<8x64xf32>
    %135 = math.tanh %134 : vector<8x64xf32>
    %cst_63 = arith.constant 1.000000e+00 : f32
    %136 = vector.broadcast %cst_63 : f32 to vector<8x64xf32>
    %137 = arith.addf %136, %135 : vector<8x64xf32>
    %138 = arith.mulf %127, %137 : vector<8x64xf32>
    %139 = arith.truncf %138 : vector<8x64xf32> to vector<8x64xbf16>
    %c0_64 = arith.constant 0 : index
    %c0_65 = arith.constant 0 : index
    %c0_66 = arith.constant 0 : index
    %140 = vector.load %arg14[%c0_64, %c0_65, %c0_66] : memref<2x64x32xbf16, #tpu.memory_space<vmem>>, vector<1x64x32xbf16>
    %141 = vector.shape_cast %140 : vector<1x64x32xbf16> to vector<64x32xbf16>
    %cst_67 = arith.constant dense<0.000000e+00> : vector<8x32xf32>
    %142 = tpu.matmul %139, %141, %cst_67 {dimension_numbers = #tpu.dot_dimension_numbers<[1], [0], [0], [1], [0, 0, 1, 1], [], []>} : vector<8x64xbf16>, vector<64x32xbf16>, vector<8x32xf32> -> vector<8x32xf32>
    %c0_68 = arith.constant 0 : index
    %c0_69 = arith.constant 0 : index
    %c0_70 = arith.constant 0 : index
    %143 = vector.load %arg15[%c0_68, %c0_69, %c0_70] : memref<2x1x32xf32, #tpu.memory_space<vmem>>, vector<1x1x32xf32>
    %144 = vector.shape_cast %143 : vector<1x1x32xf32> to vector<1x32xf32>
    %145 = vector.broadcast %144 : vector<1x32xf32> to vector<8x32xf32>
    %146 = arith.addf %142, %145 : vector<8x32xf32>
    %147 = arith.addf %146, %117 : vector<8x32xf32>
    %c0_71 = arith.constant 0 : index
    %c0_72 = arith.constant 0 : index
    %c0_73 = arith.constant 0 : index
    %148 = vector.load %arg16[%c0_71, %c0_72, %c0_73] : memref<2x1x32xf32, #tpu.memory_space<vmem>>, vector<1x1x32xf32>
    %149 = vector.shape_cast %148 : vector<1x1x32xf32> to vector<1x32xf32>
    %c0_74 = arith.constant 0 : index
    %c0_75 = arith.constant 0 : index
    %c0_76 = arith.constant 0 : index
    %150 = vector.load %arg17[%c0_74, %c0_75, %c0_76] : memref<2x1x32xf32, #tpu.memory_space<vmem>>, vector<1x1x32xf32>
    %151 = vector.shape_cast %150 : vector<1x1x32xf32> to vector<1x32xf32>
    %cst_77 = arith.constant dense<0.000000e+00> : vector<8xf32>
    %152 = vector.multi_reduction <add>, %147, %cst_77 [1] : vector<8x32xf32> to vector<8xf32>
    %153 = vector.shape_cast %152 : vector<8xf32> to vector<8x1xf32>
    %cst_78 = arith.constant 3.200000e+01 : f32
    %154 = vector.broadcast %cst_78 : f32 to vector<8x1xf32>
    %155 = arith.divf %153, %154 : vector<8x1xf32>
    %156 = vector.broadcast %155 : vector<8x1xf32> to vector<8x32xf32>
    %157 = arith.subf %147, %156 : vector<8x32xf32>
    %158 = arith.mulf %157, %157 : vector<8x32xf32>
    %cst_79 = arith.constant dense<0.000000e+00> : vector<8xf32>
    %159 = vector.multi_reduction <add>, %158, %cst_79 [1] : vector<8x32xf32> to vector<8xf32>
    %160 = vector.shape_cast %159 : vector<8xf32> to vector<8x1xf32>
    %cst_80 = arith.constant 3.200000e+01 : f32
    %161 = vector.broadcast %cst_80 : f32 to vector<8x1xf32>
    %162 = arith.divf %160, %161 : vector<8x1xf32>
    %163 = vector.broadcast %155 : vector<8x1xf32> to vector<8x32xf32>
    %164 = arith.subf %147, %163 : vector<8x32xf32>
    %cst_81 = arith.constant 9.99999996E-13 : f32
    %165 = vector.broadcast %cst_81 : f32 to vector<8x1xf32>
    %166 = arith.addf %162, %165 : vector<8x1xf32>
    %167 = math.rsqrt %166 : vector<8x1xf32>
    %168 = vector.broadcast %167 : vector<8x1xf32> to vector<8x32xf32>
    %169 = arith.mulf %164, %168 : vector<8x32xf32>
    %170 = vector.broadcast %149 : vector<1x32xf32> to vector<8x32xf32>
    %171 = arith.mulf %169, %170 : vector<8x32xf32>
    %172 = vector.broadcast %151 : vector<1x32xf32> to vector<8x32xf32>
    %173 = arith.addf %171, %172 : vector<8x32xf32>
    %c1 = arith.constant 1 : index
    %c0_82 = arith.constant 0 : index
    %c0_83 = arith.constant 0 : index
    %c0_84 = arith.constant 0 : index
    %c0_85 = arith.constant 0 : index
    %174 = vector.load %arg6[%c1, %c0_82, %c0_83, %c0_84, %c0_85] : memref<2x3x2x32x16xbf16, #tpu.memory_space<vmem>>, vector<1x3x2x32x16xbf16>
    %175 = vector.shape_cast %174 : vector<1x3x2x32x16xbf16> to vector<3x2x32x16xbf16>
    %c1_86 = arith.constant 1 : index
    %c0_87 = arith.constant 0 : index
    %c0_88 = arith.constant 0 : index
    %c0_89 = arith.constant 0 : index
    %c0_90 = arith.constant 0 : index
    %176 = vector.load %arg7[%c1_86, %c0_87, %c0_88, %c0_89, %c0_90] : memref<2x3x2x1x16xf32, #tpu.memory_space<vmem>>, vector<1x3x2x1x16xf32>
    %177 = vector.shape_cast %176 : vector<1x3x2x1x16xf32> to vector<3x2x1x16xf32>
    %178 = arith.truncf %173 : vector<8x32xf32> to vector<8x32xbf16>
    %179 = vector.shape_cast %178 : vector<8x32xbf16> to vector<1x8x32xbf16>
    %180 = vector.shape_cast %179 : vector<1x8x32xbf16> to vector<1x8x32xbf16>
    %181 = vector.broadcast %180 : vector<1x8x32xbf16> to vector<2x8x32xbf16>
    %182 = vector.extract_strided_slice %175 {offsets = [0, 0, 0, 0], sizes = [1, 2, 32, 16], strides = [1, 1, 1, 1]} : vector<3x2x32x16xbf16> to vector<1x2x32x16xbf16>
    %183 = vector.shape_cast %182 : vector<1x2x32x16xbf16> to vector<2x32x16xbf16>
    "tpu.trace_start"() <{level = 10 : i32, message = "hsk,hkd->hsd"}> : () -> ()
    %cst_91 = arith.constant dense<0.000000e+00> : vector<2x8x16xf32>
    %184 = tpu.matmul %181, %183, %cst_91 {dimension_numbers = #tpu.dot_dimension_numbers<[2], [1], [1], [2], [0, 0, 0, 1, 1, 2], [0], [0]>} : vector<2x8x32xbf16>, vector<2x32x16xbf16>, vector<2x8x16xf32> -> vector<2x8x16xf32>
    "tpu.trace_stop"() : () -> ()
    %185 = vector.extract_strided_slice %177 {offsets = [0, 0, 0, 0], sizes = [1, 2, 1, 16], strides = [1, 1, 1, 1]} : vector<3x2x1x16xf32> to vector<1x2x1x16xf32>
    %186 = vector.shape_cast %185 : vector<1x2x1x16xf32> to vector<2x1x16xf32>
    %187 = vector.broadcast %186 : vector<2x1x16xf32> to vector<2x8x16xf32>
    %188 = arith.addf %184, %187 : vector<2x8x16xf32>
    %189 = vector.extract_strided_slice %175 {offsets = [1, 0, 0, 0], sizes = [1, 2, 32, 16], strides = [1, 1, 1, 1]} : vector<3x2x32x16xbf16> to vector<1x2x32x16xbf16>
    %190 = vector.shape_cast %189 : vector<1x2x32x16xbf16> to vector<2x32x16xbf16>
    "tpu.trace_start"() <{level = 10 : i32, message = "hsk,hkd->hsd"}> : () -> ()
    %cst_92 = arith.constant dense<0.000000e+00> : vector<2x8x16xf32>
    %191 = tpu.matmul %181, %190, %cst_92 {dimension_numbers = #tpu.dot_dimension_numbers<[2], [1], [1], [2], [0, 0, 0, 1, 1, 2], [0], [0]>} : vector<2x8x32xbf16>, vector<2x32x16xbf16>, vector<2x8x16xf32> -> vector<2x8x16xf32>
    "tpu.trace_stop"() : () -> ()
    %192 = vector.extract_strided_slice %177 {offsets = [1, 0, 0, 0], sizes = [1, 2, 1, 16], strides = [1, 1, 1, 1]} : vector<3x2x1x16xf32> to vector<1x2x1x16xf32>
    %193 = vector.shape_cast %192 : vector<1x2x1x16xf32> to vector<2x1x16xf32>
    %194 = vector.broadcast %193 : vector<2x1x16xf32> to vector<2x8x16xf32>
    %195 = arith.addf %191, %194 : vector<2x8x16xf32>
    %196 = vector.extract_strided_slice %175 {offsets = [2, 0, 0, 0], sizes = [1, 2, 32, 16], strides = [1, 1, 1, 1]} : vector<3x2x32x16xbf16> to vector<1x2x32x16xbf16>
    %197 = vector.shape_cast %196 : vector<1x2x32x16xbf16> to vector<2x32x16xbf16>
    "tpu.trace_start"() <{level = 10 : i32, message = "hsk,hkd->hsd"}> : () -> ()
    %cst_93 = arith.constant dense<0.000000e+00> : vector<2x8x16xf32>
    %198 = tpu.matmul %181, %197, %cst_93 {dimension_numbers = #tpu.dot_dimension_numbers<[2], [1], [1], [2], [0, 0, 0, 1, 1, 2], [0], [0]>} : vector<2x8x32xbf16>, vector<2x32x16xbf16>, vector<2x8x16xf32> -> vector<2x8x16xf32>
    "tpu.trace_stop"() : () -> ()
    %199 = vector.extract_strided_slice %177 {offsets = [2, 0, 0, 0], sizes = [1, 2, 1, 16], strides = [1, 1, 1, 1]} : vector<3x2x1x16xf32> to vector<1x2x1x16xf32>
    %200 = vector.shape_cast %199 : vector<1x2x1x16xf32> to vector<2x1x16xf32>
    %201 = vector.broadcast %200 : vector<2x1x16xf32> to vector<2x8x16xf32>
    %202 = arith.addf %198, %201 : vector<2x8x16xf32>
    %203 = arith.truncf %188 : vector<2x8x16xf32> to vector<2x8x16xbf16>
    %204 = arith.truncf %195 : vector<2x8x16xf32> to vector<2x8x16xbf16>
    "tpu.trace_start"() <{level = 10 : i32, message = "hqd,hkd->hqk"}> : () -> ()
    %cst_94 = arith.constant dense<0.000000e+00> : vector<2x8x8xf32>
    %205 = tpu.matmul %203, %204, %cst_94 {dimension_numbers = #tpu.dot_dimension_numbers<[2], [2], [1], [1], [0, 0, 0, 1, 1, 1], [0], [0]>} : vector<2x8x16xbf16>, vector<2x8x16xbf16>, vector<2x8x8xf32> -> vector<2x8x8xf32>
    "tpu.trace_stop"() : () -> ()
    %cst_95 = arith.constant 2.500000e-01 : f32
    %206 = vector.broadcast %cst_95 : f32 to vector<2x8x8xf32>
    %207 = arith.mulf %205, %206 : vector<2x8x8xf32>
    %208 = vector.broadcast %32 : vector<1x1x8xf32> to vector<2x8x8xf32>
    %209 = arith.addf %207, %208 : vector<2x8x8xf32>
    %cst_96 = arith.constant dense<0xFF800000> : vector<2x8xf32>
    %210 = vector.multi_reduction <maximumf>, %209, %cst_96 [2] : vector<2x8x8xf32> to vector<2x8xf32>
    %211 = vector.shape_cast %210 : vector<2x8xf32> to vector<2x8x1xf32>
    %212 = vector.broadcast %211 : vector<2x8x1xf32> to vector<2x8x8xf32>
    %213 = arith.subf %209, %212 : vector<2x8x8xf32>
    %214 = math.exp %213 : vector<2x8x8xf32>
    %cst_97 = arith.constant dense<0.000000e+00> : vector<2x8xf32>
    %215 = vector.multi_reduction <add>, %214, %cst_97 [2] : vector<2x8x8xf32> to vector<2x8xf32>
    %216 = vector.shape_cast %215 : vector<2x8xf32> to vector<2x8x1xf32>
    %217 = tpu.reciprocal %216 {approx = true} : vector<2x8x1xf32> -> vector<2x8x1xf32>
    %218 = vector.broadcast %217 : vector<2x8x1xf32> to vector<2x8x8xf32>
    %219 = arith.mulf %214, %218 : vector<2x8x8xf32>
    %220 = arith.truncf %219 : vector<2x8x8xf32> to vector<2x8x8xbf16>
    %221 = arith.truncf %202 : vector<2x8x16xf32> to vector<2x8x16xbf16>
    "tpu.trace_start"() <{level = 10 : i32, message = "hqk,hkd->hqd"}> : () -> ()
    %cst_98 = arith.constant dense<0.000000e+00> : vector<2x8x16xf32>
    %222 = tpu.matmul %220, %221, %cst_98 {dimension_numbers = #tpu.dot_dimension_numbers<[2], [1], [1], [2], [0, 0, 0, 1, 1, 2], [0], [0]>} : vector<2x8x8xbf16>, vector<2x8x16xbf16>, vector<2x8x16xf32> -> vector<2x8x16xf32>
    "tpu.trace_stop"() : () -> ()
    %223 = arith.truncf %222 : vector<2x8x16xf32> to vector<2x8x16xbf16>
    %c1_99 = arith.constant 1 : index
    %c0_100 = arith.constant 0 : index
    %c0_101 = arith.constant 0 : index
    %c0_102 = arith.constant 0 : index
    %224 = vector.load %arg8[%c1_99, %c0_100, %c0_101, %c0_102] : memref<2x2x16x32xbf16, #tpu.memory_space<vmem>>, vector<1x2x16x32xbf16>
    %225 = vector.shape_cast %224 : vector<1x2x16x32xbf16> to vector<2x16x32xbf16>
    "tpu.trace_start"() <{level = 10 : i32, message = "hsd,hdo->hso"}> : () -> ()
    %cst_103 = arith.constant dense<0.000000e+00> : vector<2x8x32xf32>
    %226 = tpu.matmul %223, %225, %cst_103 {dimension_numbers = #tpu.dot_dimension_numbers<[2], [1], [1], [2], [0, 0, 0, 1, 1, 2], [0], [0]>} : vector<2x8x16xbf16>, vector<2x16x32xbf16>, vector<2x8x32xf32> -> vector<2x8x32xf32>
    "tpu.trace_stop"() : () -> ()
    %cst_104 = arith.constant dense<0.000000e+00> : vector<8x32xf32>
    %227 = vector.multi_reduction <add>, %226, %cst_104 [0] : vector<2x8x32xf32> to vector<8x32xf32>
    %c1_105 = arith.constant 1 : index
    %c0_106 = arith.constant 0 : index
    %c0_107 = arith.constant 0 : index
    %228 = vector.load %arg9[%c1_105, %c0_106, %c0_107] : memref<2x1x32xf32, #tpu.memory_space<vmem>>, vector<1x1x32xf32>
    %229 = vector.shape_cast %228 : vector<1x1x32xf32> to vector<1x32xf32>
    %230 = vector.broadcast %229 : vector<1x32xf32> to vector<8x32xf32>
    %231 = arith.addf %227, %230 : vector<8x32xf32>
    %232 = arith.addf %231, %173 : vector<8x32xf32>
    %c1_108 = arith.constant 1 : index
    %c0_109 = arith.constant 0 : index
    %c0_110 = arith.constant 0 : index
    %233 = vector.load %arg10[%c1_108, %c0_109, %c0_110] : memref<2x1x32xf32, #tpu.memory_space<vmem>>, vector<1x1x32xf32>
    %234 = vector.shape_cast %233 : vector<1x1x32xf32> to vector<1x32xf32>
    %c1_111 = arith.constant 1 : index
    %c0_112 = arith.constant 0 : index
    %c0_113 = arith.constant 0 : index
    %235 = vector.load %arg11[%c1_111, %c0_112, %c0_113] : memref<2x1x32xf32, #tpu.memory_space<vmem>>, vector<1x1x32xf32>
    %236 = vector.shape_cast %235 : vector<1x1x32xf32> to vector<1x32xf32>
    %cst_114 = arith.constant dense<0.000000e+00> : vector<8xf32>
    %237 = vector.multi_reduction <add>, %232, %cst_114 [1] : vector<8x32xf32> to vector<8xf32>
    %238 = vector.shape_cast %237 : vector<8xf32> to vector<8x1xf32>
    %cst_115 = arith.constant 3.200000e+01 : f32
    %239 = vector.broadcast %cst_115 : f32 to vector<8x1xf32>
    %240 = arith.divf %238, %239 : vector<8x1xf32>
    %241 = vector.broadcast %240 : vector<8x1xf32> to vector<8x32xf32>
    %242 = arith.subf %232, %241 : vector<8x32xf32>
    %243 = arith.mulf %242, %242 : vector<8x32xf32>
    %cst_116 = arith.constant dense<0.000000e+00> : vector<8xf32>
    %244 = vector.multi_reduction <add>, %243, %cst_116 [1] : vector<8x32xf32> to vector<8xf32>
    %245 = vector.shape_cast %244 : vector<8xf32> to vector<8x1xf32>
    %cst_117 = arith.constant 3.200000e+01 : f32
    %246 = vector.broadcast %cst_117 : f32 to vector<8x1xf32>
    %247 = arith.divf %245, %246 : vector<8x1xf32>
    %248 = vector.broadcast %240 : vector<8x1xf32> to vector<8x32xf32>
    %249 = arith.subf %232, %248 : vector<8x32xf32>
    %cst_118 = arith.constant 9.99999996E-13 : f32
    %250 = vector.broadcast %cst_118 : f32 to vector<8x1xf32>
    %251 = arith.addf %247, %250 : vector<8x1xf32>
    %252 = math.rsqrt %251 : vector<8x1xf32>
    %253 = vector.broadcast %252 : vector<8x1xf32> to vector<8x32xf32>
    %254 = arith.mulf %249, %253 : vector<8x32xf32>
    %255 = vector.broadcast %234 : vector<1x32xf32> to vector<8x32xf32>
    %256 = arith.mulf %254, %255 : vector<8x32xf32>
    %257 = vector.broadcast %236 : vector<1x32xf32> to vector<8x32xf32>
    %258 = arith.addf %256, %257 : vector<8x32xf32>
    %259 = arith.truncf %258 : vector<8x32xf32> to vector<8x32xbf16>
    %c1_119 = arith.constant 1 : index
    %c0_120 = arith.constant 0 : index
    %c0_121 = arith.constant 0 : index
    %260 = vector.load %arg12[%c1_119, %c0_120, %c0_121] : memref<2x32x64xbf16, #tpu.memory_space<vmem>>, vector<1x32x64xbf16>
    %261 = vector.shape_cast %260 : vector<1x32x64xbf16> to vector<32x64xbf16>
    %cst_122 = arith.constant dense<0.000000e+00> : vector<8x64xf32>
    %262 = tpu.matmul %259, %261, %cst_122 {dimension_numbers = #tpu.dot_dimension_numbers<[1], [0], [0], [1], [0, 0, 1, 1], [], []>} : vector<8x32xbf16>, vector<32x64xbf16>, vector<8x64xf32> -> vector<8x64xf32>
    %c1_123 = arith.constant 1 : index
    %c0_124 = arith.constant 0 : index
    %c0_125 = arith.constant 0 : index
    %263 = vector.load %arg13[%c1_123, %c0_124, %c0_125] : memref<2x1x64xf32, #tpu.memory_space<vmem>>, vector<1x1x64xf32>
    %264 = vector.shape_cast %263 : vector<1x1x64xf32> to vector<1x64xf32>
    %265 = vector.broadcast %264 : vector<1x64xf32> to vector<8x64xf32>
    %266 = arith.addf %262, %265 : vector<8x64xf32>
    %cst_126 = arith.constant 5.000000e-01 : f32
    %267 = vector.broadcast %cst_126 : f32 to vector<8x64xf32>
    %268 = arith.mulf %267, %266 : vector<8x64xf32>
    %cst_127 = arith.constant 4.471500e-02 : f32
    %269 = vector.broadcast %cst_127 : f32 to vector<8x64xf32>
    %270 = arith.mulf %269, %266 : vector<8x64xf32>
    %271 = arith.mulf %270, %266 : vector<8x64xf32>
    %272 = arith.mulf %271, %266 : vector<8x64xf32>
    %273 = arith.addf %266, %272 : vector<8x64xf32>
    %cst_128 = arith.constant 0.797884583 : f32
    %274 = vector.broadcast %cst_128 : f32 to vector<8x64xf32>
    %275 = arith.mulf %274, %273 : vector<8x64xf32>
    %276 = math.tanh %275 : vector<8x64xf32>
    %cst_129 = arith.constant 1.000000e+00 : f32
    %277 = vector.broadcast %cst_129 : f32 to vector<8x64xf32>
    %278 = arith.addf %277, %276 : vector<8x64xf32>
    %279 = arith.mulf %268, %278 : vector<8x64xf32>
    %280 = arith.truncf %279 : vector<8x64xf32> to vector<8x64xbf16>
    %c1_130 = arith.constant 1 : index
    %c0_131 = arith.constant 0 : index
    %c0_132 = arith.constant 0 : index
    %281 = vector.load %arg14[%c1_130, %c0_131, %c0_132] : memref<2x64x32xbf16, #tpu.memory_space<vmem>>, vector<1x64x32xbf16>
    %282 = vector.shape_cast %281 : vector<1x64x32xbf16> to vector<64x32xbf16>
    %cst_133 = arith.constant dense<0.000000e+00> : vector<8x32xf32>
    %283 = tpu.matmul %280, %282, %cst_133 {dimension_numbers = #tpu.dot_dimension_numbers<[1], [0], [0], [1], [0, 0, 1, 1], [], []>} : vector<8x64xbf16>, vector<64x32xbf16>, vector<8x32xf32> -> vector<8x32xf32>
    %c1_134 = arith.constant 1 : index
    %c0_135 = arith.constant 0 : index
    %c0_136 = arith.constant 0 : index
    %284 = vector.load %arg15[%c1_134, %c0_135, %c0_136] : memref<2x1x32xf32, #tpu.memory_space<vmem>>, vector<1x1x32xf32>
    %285 = vector.shape_cast %284 : vector<1x1x32xf32> to vector<1x32xf32>
    %286 = vector.broadcast %285 : vector<1x32xf32> to vector<8x32xf32>
    %287 = arith.addf %283, %286 : vector<8x32xf32>
    %288 = arith.addf %287, %258 : vector<8x32xf32>
    %c1_137 = arith.constant 1 : index
    %c0_138 = arith.constant 0 : index
    %c0_139 = arith.constant 0 : index
    %289 = vector.load %arg16[%c1_137, %c0_138, %c0_139] : memref<2x1x32xf32, #tpu.memory_space<vmem>>, vector<1x1x32xf32>
    %290 = vector.shape_cast %289 : vector<1x1x32xf32> to vector<1x32xf32>
    %c1_140 = arith.constant 1 : index
    %c0_141 = arith.constant 0 : index
    %c0_142 = arith.constant 0 : index
    %291 = vector.load %arg17[%c1_140, %c0_141, %c0_142] : memref<2x1x32xf32, #tpu.memory_space<vmem>>, vector<1x1x32xf32>
    %292 = vector.shape_cast %291 : vector<1x1x32xf32> to vector<1x32xf32>
    %cst_143 = arith.constant dense<0.000000e+00> : vector<8xf32>
    %293 = vector.multi_reduction <add>, %288, %cst_143 [1] : vector<8x32xf32> to vector<8xf32>
    %294 = vector.shape_cast %293 : vector<8xf32> to vector<8x1xf32>
    %cst_144 = arith.constant 3.200000e+01 : f32
    %295 = vector.broadcast %cst_144 : f32 to vector<8x1xf32>
    %296 = arith.divf %294, %295 : vector<8x1xf32>
    %297 = vector.broadcast %296 : vector<8x1xf32> to vector<8x32xf32>
    %298 = arith.subf %288, %297 : vector<8x32xf32>
    %299 = arith.mulf %298, %298 : vector<8x32xf32>
    %cst_145 = arith.constant dense<0.000000e+00> : vector<8xf32>
    %300 = vector.multi_reduction <add>, %299, %cst_145 [1] : vector<8x32xf32> to vector<8xf32>
    %301 = vector.shape_cast %300 : vector<8xf32> to vector<8x1xf32>
    %cst_146 = arith.constant 3.200000e+01 : f32
    %302 = vector.broadcast %cst_146 : f32 to vector<8x1xf32>
    %303 = arith.divf %301, %302 : vector<8x1xf32>
    %304 = vector.broadcast %296 : vector<8x1xf32> to vector<8x32xf32>
    %305 = arith.subf %288, %304 : vector<8x32xf32>
    %cst_147 = arith.constant 9.99999996E-13 : f32
    %306 = vector.broadcast %cst_147 : f32 to vector<8x1xf32>
    %307 = arith.addf %303, %306 : vector<8x1xf32>
    %308 = math.rsqrt %307 : vector<8x1xf32>
    %309 = vector.broadcast %308 : vector<8x1xf32> to vector<8x32xf32>
    %310 = arith.mulf %305, %309 : vector<8x32xf32>
    %311 = vector.broadcast %290 : vector<1x32xf32> to vector<8x32xf32>
    %312 = arith.mulf %310, %311 : vector<8x32xf32>
    %313 = vector.broadcast %292 : vector<1x32xf32> to vector<8x32xf32>
    %314 = arith.addf %312, %313 : vector<8x32xf32>
    %315 = vector.extract_strided_slice %314 {offsets = [0, 0], sizes = [1, 32], strides = [1, 1]} : vector<8x32xf32> to vector<1x32xf32>
    %316 = arith.truncf %315 : vector<1x32xf32> to vector<1x32xbf16>
    %c0_148 = arith.constant 0 : index
    %c0_149 = arith.constant 0 : index
    %317 = vector.load %arg18[%c0_148, %c0_149] : memref<32x128xbf16, #tpu.memory_space<vmem>>, vector<32x128xbf16>
    %cst_150 = arith.constant dense<0.000000e+00> : vector<1x128xf32>
    %318 = tpu.matmul %316, %317, %cst_150 {dimension_numbers = #tpu.dot_dimension_numbers<[1], [0], [0], [1], [0, 0, 1, 1], [], []>} : vector<1x32xbf16>, vector<32x128xbf16>, vector<1x128xf32> -> vector<1x128xf32>
    %c0_151 = arith.constant 0 : index
    %c0_152 = arith.constant 0 : index
    %319 = vector.load %arg19[%c0_151, %c0_152] : memref<1x128xf32, #tpu.memory_space<vmem>>, vector<1x128xf32>
    %320 = arith.addf %318, %319 : vector<1x128xf32>
    %c0_153 = arith.constant 0 : index
    %c0_154 = arith.constant 0 : index
    %c0_155 = arith.constant 0 : index
    %321 = vector.load %arg20[%c0_153, %c0_154, %c0_155] : memref<1x1x128xf32, #tpu.memory_space<vmem>>, vector<1x1x128xf32>
    %322 = vector.shape_cast %321 : vector<1x1x128xf32> to vector<1x128xf32>
    %323 = vector.shape_cast %320 : vector<1x128xf32> to vector<1x1x128xf32>
    tpu.vector_store %arg20[%c0_153, %c0_154, %c0_155], %323 {strides = array<i32>} : memref<1x1x128xf32, #tpu.memory_space<vmem>>, vector<1x1x128xf32>,
    %c0_156 = arith.constant 0 : index
    %c0_157 = arith.constant 0 : index
    %c0_158 = arith.constant 0 : index
    %324 = vector.load %arg3[%c0_156, %c0_157, %c0_158] : memref<1x1x128xf32, #tpu.memory_space<vmem>>, vector<1x1x128xf32>
    %325 = vector.shape_cast %324 : vector<1x1x128xf32> to vector<1x128xf32>
    %cst_159 = arith.constant 0.000000e+00 : f32
    %326 = vector.broadcast %cst_159 : f32 to vector<1x128xf32>
    %327 = arith.maximumf %320, %326 : vector<1x128xf32>
    %328 = arith.mulf %320, %325 : vector<1x128xf32>
    %329 = arith.subf %327, %328 : vector<1x128xf32>
    %330 = math.absf %320 : vector<1x128xf32>
    %cst_160 = arith.constant 0.000000e+00 : f32
    %331 = vector.broadcast %cst_160 : f32 to vector<1x128xf32>
    %332 = arith.subf %331, %330 : vector<1x128xf32>
    %333 = math.exp %332 : vector<1x128xf32>
    %cst_161 = arith.constant 1.000000e+00 : f32
    %334 = vector.broadcast %cst_161 : f32 to vector<1x128xf32>
    %335 = arith.addf %334, %333 : vector<1x128xf32>
    %336 = math.log %335 : vector<1x128xf32>
    %337 = arith.addf %329, %336 : vector<1x128xf32>
    %338 = tpu.iota {dimensions = array<i32: 1>} : vector<1x128xi32>
    %c4_i32 = arith.constant 4 : i32
    %339 = vector.broadcast %c4_i32 : i32 to vector<1x128xi32>
    %340 = arith.cmpi slt, %338, %339 : vector<1x128xi32>
    %cst_162 = arith.constant 0.000000e+00 : f32
    %341 = vector.broadcast %cst_162 : f32 to vector<1x128xf32>
    %342 = arith.select %340, %337, %341 : vector<1x128xi1>, vector<1x128xf32>
    %cst_163 = arith.constant dense<0.000000e+00> : vector<1xf32>
    %343 = vector.multi_reduction <add>, %342, %cst_163 [1] : vector<1x128xf32> to vector<1xf32>
    %344 = vector.shape_cast %343 : vector<1xf32> to vector<1x1xf32>
    %c0_164 = arith.constant 0 : index
    %c0_165 = arith.constant 0 : index
    %c0_166 = arith.constant 0 : index
    %345 = vector.load %arg21[%c0_164, %c0_165, %c0_166] : memref<1x1x1xf32, #tpu.memory_space<vmem>>, vector<1x1x1xf32>
    %346 = vector.shape_cast %345 : vector<1x1x1xf32> to vector<1x1xf32>
    %347 = vector.shape_cast %344 : vector<1x1xf32> to vector<1x1x1xf32>
    tpu.vector_store %arg21[%c0_164, %c0_165, %c0_166], %347 {strides = array<i32>} : memref<1x1x1xf32, #tpu.memory_space<vmem>>, vector<1x1x1xf32>,
    return
  }
  func.func @transform_0(%arg0: i32) -> (i32, i32, i32) {
    %c0_i32 = arith.constant 0 : i32
    %c0_i32_0 = arith.constant 0 : i32
    %c0_i32_1 = arith.constant 0 : i32
    return %arg0, %c0_i32, %c0_i32_0 : i32, i32, i32
  }
  func.func @transform_1(%arg0: i32) -> (i32, i32, i32) {
    %c0_i32 = arith.constant 0 : i32
    %c0_i32_0 = arith.constant 0 : i32
    %c0_i32_1 = arith.constant 0 : i32
    return %arg0, %c0_i32, %c0_i32_0 : i32, i32, i32
  }
  func.func @transform_2(%arg0: i32) -> (i32, i32, i32) {
    %c0_i32 = arith.constant 0 : i32
    %c0_i32_0 = arith.constant 0 : i32
    %c0_i32_1 = arith.constant 0 : i32
    return %arg0, %c0_i32, %c0_i32_0 : i32, i32, i32
  }
  func.func @transform_3(%arg0: i32) -> (i32, i32) {
    %c0_i32 = arith.constant 0 : i32
    %c0_i32_0 = arith.constant 0 : i32
    %c0_i32_1 = arith.constant 0 : i32
    return %c0_i32, %c0_i32_0 : i32, i32
  }
  func.func @transform_4(%arg0: i32) -> (i32, i32) {
    %c0_i32 = arith.constant 0 : i32
    %c0_i32_0 = arith.constant 0 : i32
    %c0_i32_1 = arith.constant 0 : i32
    return %c0_i32, %c0_i32_0 : i32, i32
  }
  func.func @transform_5(%arg0: i32) -> (i32, i32, i32, i32, i32) {
    %c0_i32 = arith.constant 0 : i32
    %c0_i32_0 = arith.constant 0 : i32
    %c0_i32_1 = arith.constant 0 : i32
    %c0_i32_2 = arith.constant 0 : i32
    %c0_i32_3 = arith.constant 0 : i32
    %c0_i32_4 = arith.constant 0 : i32
    return %c0_i32, %c0_i32_0, %c0_i32_1, %c0_i32_2, %c0_i32_3 : i32, i32, i32, i32, i32
  }
  func.func @transform_6(%arg0: i32) -> (i32, i32, i32, i32, i32) {
    %c0_i32 = arith.constant 0 : i32
    %c0_i32_0 = arith.constant 0 : i32
    %c0_i32_1 = arith.constant 0 : i32
    %c0_i32_2 = arith.constant 0 : i32
    %c0_i32_3 = arith.constant 0 : i32
    %c0_i32_4 = arith.constant 0 : i32
    return %c0_i32, %c0_i32_0, %c0_i32_1, %c0_i32_2, %c0_i32_3 : i32, i32, i32, i32, i32
  }
  func.func @transform_7(%arg0: i32) -> (i32, i32, i32, i32) {
    %c0_i32 = arith.constant 0 : i32
    %c0_i32_0 = arith.constant 0 : i32
    %c0_i32_1 = arith.constant 0 : i32
    %c0_i32_2 = arith.constant 0 : i32
    %c0_i32_3 = arith.constant 0 : i32
    return %c0_i32, %c0_i32_0, %c0_i32_1, %c0_i32_2 : i32, i32, i32, i32
  }
  func.func @transform_8(%arg0: i32) -> (i32, i32, i32) {
    %c0_i32 = arith.constant 0 : i32
    %c0_i32_0 = arith.constant 0 : i32
    %c0_i32_1 = arith.constant 0 : i32
    %c0_i32_2 = arith.constant 0 : i32
    return %c0_i32, %c0_i32_0, %c0_i32_1 : i32, i32, i32
  }
  func.func @transform_9(%arg0: i32) -> (i32, i32, i32) {
    %c0_i32 = arith.constant 0 : i32
    %c0_i32_0 = arith.constant 0 : i32
    %c0_i32_1 = arith.constant 0 : i32
    %c0_i32_2 = arith.constant 0 : i32
    return %c0_i32, %c0_i32_0, %c0_i32_1 : i32, i32, i32
  }
  func.func @transform_10(%arg0: i32) -> (i32, i32, i32) {
    %c0_i32 = arith.constant 0 : i32
    %c0_i32_0 = arith.constant 0 : i32
    %c0_i32_1 = arith.constant 0 : i32
    %c0_i32_2 = arith.constant 0 : i32
    return %c0_i32, %c0_i32_0, %c0_i32_1 : i32, i32, i32
  }
  func.func @transform_11(%arg0: i32) -> (i32, i32, i32) {
    %c0_i32 = arith.constant 0 : i32
    %c0_i32_0 = arith.constant 0 : i32
    %c0_i32_1 = arith.constant 0 : i32
    %c0_i32_2 = arith.constant 0 : i32
    return %c0_i32, %c0_i32_0, %c0_i32_1 : i32, i32, i32
  }
  func.func @transform_12(%arg0: i32) -> (i32, i32, i32) {
    %c0_i32 = arith.constant 0 : i32
    %c0_i32_0 = arith.constant 0 : i32
    %c0_i32_1 = arith.constant 0 : i32
    %c0_i32_2 = arith.constant 0 : i32
    return %c0_i32, %c0_i32_0, %c0_i32_1 : i32, i32, i32
  }
  func.func @transform_13(%arg0: i32) -> (i32, i32, i32) {
    %c0_i32 = arith.constant 0 : i32
    %c0_i32_0 = arith.constant 0 : i32
    %c0_i32_1 = arith.constant 0 : i32
    %c0_i32_2 = arith.constant 0 : i32
    return %c0_i32, %c0_i32_0, %c0_i32_1 : i32, i32, i32
  }
  func.func @transform_14(%arg0: i32) -> (i32, i32, i32) {
    %c0_i32 = arith.constant 0 : i32
    %c0_i32_0 = arith.constant 0 : i32
    %c0_i32_1 = arith.constant 0 : i32
    %c0_i32_2 = arith.constant 0 : i32
    return %c0_i32, %c0_i32_0, %c0_i32_1 : i32, i32, i32
  }
  func.func @transform_15(%arg0: i32) -> (i32, i32, i32) {
    %c0_i32 = arith.constant 0 : i32
    %c0_i32_0 = arith.constant 0 : i32
    %c0_i32_1 = arith.constant 0 : i32
    %c0_i32_2 = arith.constant 0 : i32
    return %c0_i32, %c0_i32_0, %c0_i32_1 : i32, i32, i32
  }
  func.func @transform_16(%arg0: i32) -> (i32, i32, i32) {
    %c0_i32 = arith.constant 0 : i32
    %c0_i32_0 = arith.constant 0 : i32
    %c0_i32_1 = arith.constant 0 : i32
    %c0_i32_2 = arith.constant 0 : i32
    return %c0_i32, %c0_i32_0, %c0_i32_1 : i32, i32, i32
  }
  func.func @transform_17(%arg0: i32) -> (i32, i32) {
    %c0_i32 = arith.constant 0 : i32
    %c0_i32_0 = arith.constant 0 : i32
    %c0_i32_1 = arith.constant 0 : i32
    return %c0_i32, %c0_i32_0 : i32, i32
  }
  func.func @transform_18(%arg0: i32) -> (i32, i32) {
    %c0_i32 = arith.constant 0 : i32
    %c0_i32_0 = arith.constant 0 : i32
    %c0_i32_1 = arith.constant 0 : i32
    return %c0_i32, %c0_i32_0 : i32, i32
  }
  func.func @transform_19(%arg0: i32) -> (i32, i32, i32) {
    %c0_i32 = arith.constant 0 : i32
    %c0_i32_0 = arith.constant 0 : i32
    %c0_i32_1 = arith.constant 0 : i32
    return %arg0, %c0_i32, %c0_i32_0 : i32, i32, i32
  }
  func.func @transform_20(%arg0: i32) -> (i32, i32, i32) {
    %c0_i32 = arith.constant 0 : i32
    %c0_i32_0 = arith.constant 0 : i32
    %c0_i32_1 = arith.constant 0 : i32
    return %arg0, %c0_i32, %c0_i32_0 : i32, i32, i32
  }
}

</mosaic_0001>

<llo_original>
// kernel: tpu_custom_call.1
$region0: #{tpu_custom_call.1}
  #allocation0 [shape = 'u32[]', space=smem, size = 0x4, offset = 0x4, fixed_abs, tag = 'smem constant byte address 0x4 - core index']
  #allocation1 [shape = 'u32[72,128]{1,0:T(1,128)}', space=vmem, size = 0x9000, scoped, tag = 'internal scratch']
  %s0 = inlined_call_operand.vmem [shape: f32[2,8,32], index: 0, kind: input, shape index: {}]
  %s1 = inlined_call_operand.vmem [shape: f32[2,1,8], index: 1, kind: input, shape index: {}]
  %s2 = inlined_call_operand.vmem [shape: f32[2,1,128], index: 2, kind: input, shape index: {}]
  %s3 = inlined_call_operand.vmem [shape: f32[1,32], index: 3, kind: input, shape index: {}]
  %s4 = inlined_call_operand.vmem [shape: f32[1,32], index: 4, kind: input, shape index: {}]
  %s5 = inlined_call_operand.vmem [shape: bf16[2,3,2,32,16], index: 5, kind: input, shape index: {}]
  %s6 = inlined_call_operand.vmem [shape: f32[2,3,2,1,16], index: 6, kind: input, shape index: {}]
  %s7 = inlined_call_operand.vmem [shape: bf16[2,2,16,32], index: 7, kind: input, shape index: {}]
  %s8 = inlined_call_operand.vmem [shape: f32[2,1,32], index: 8, kind: input, shape index: {}]
  %s9 = inlined_call_operand.vmem [shape: f32[2,1,32], index: 9, kind: input, shape index: {}]
  %s10 = inlined_call_operand.vmem [shape: f32[2,1,32], index: 10, kind: input, shape index: {}]
  %s11 = inlined_call_operand.vmem [shape: bf16[2,32,64], index: 11, kind: input, shape index: {}]
  %s12 = inlined_call_operand.vmem [shape: f32[2,1,64], index: 12, kind: input, shape index: {}]
  %s13 = inlined_call_operand.vmem [shape: bf16[2,64,32], index: 13, kind: input, shape index: {}]
  %s14 = inlined_call_operand.vmem [shape: f32[2,1,32], index: 14, kind: input, shape index: {}]
  %s15 = inlined_call_operand.vmem [shape: f32[2,1,32], index: 15, kind: input, shape index: {}]
  %s16 = inlined_call_operand.vmem [shape: f32[2,1,32], index: 16, kind: input, shape index: {}]
  %s17 = inlined_call_operand.vmem [shape: bf16[32,128], index: 17, kind: input, shape index: {}]
  %s18 = inlined_call_operand.vmem [shape: f32[1,128], index: 18, kind: input, shape index: {}]
  %s19 = inlined_call_operand.hbm [shape: f32[2,1,128], index: 19, kind: output, shape index: {0}]
  %s20 = inlined_call_operand.vmem [shape: f32[2,1,1], index: 20, kind: output, shape index: {1}]
  %21 = xla_tuple %s19, %s20
  %s22 = sld [smem:[#allocation0]]
  $region117: #{tpu_custom_call.1} parent=0
    _
  %s24 = ssub.s32 1, %s22
  %s25 = scalar_select 0, %s24, %s22
  $region1: #{tpu_custom_call.1} parent=0
    #allocation2 [shape = 'u8[1024]{0}', space=vmem, size = 0x400, scoped, tag = 'output window, operand 0']
    #allocation3 [shape = 's32[2]{0}', space=sflag, size = 0x8, scoped, tag = 'scoped memory for tpu_custom_call.1']
    %26 = vsyncpa [#allocation3], 0
    %s27 = scalar_lea.sflag [#allocation3], 1
    %28 = vsyncpa %s27, 0
    loop: start=0, step=1, limit=4
    $region2: #{tpu_custom_call.1} parent=1 // loop_pre_header
      _
    $region3: #{tpu_custom_call.1} parent=1 // loop_header
      %s30 = sphi 0, %s34
      %p31 = scmp.ge.s32.totalorder %s30, 4
      %s40 = sphi 0, %s42
      %s43 = sphi 0, %s40
      %s44 = sphi 0, %s43
      %s60 = sphi 0, %s44
      %s66 = sphi 0, %s68
      %s69 = sphi 0, %s66
      %s70 = sphi 0, %s69
      %s86 = sphi 0, %s70
      %s92 = sphi 0, %s94
      %s95 = sphi 0, %s92
      %s96 = sphi 0, %s95
      %s112 = sphi 0, %s96
      %s116 = sphi 0, %s116
      %s118 = sphi 0, %s116
      %s119 = sphi 0, %s118
      %s133 = sphi 0, %s119
      %s137 = sphi 0, %s137
      %s139 = sphi 0, %s137
      %s140 = sphi 0, %s139
      %s154 = sphi 0, %s140
      %s158 = sphi 0, %s158
      %s160 = sphi 0, %s158
      %s161 = sphi 0, %s160
      %s175 = sphi 0, %s161
      %s179 = sphi 0, %s179
      %s181 = sphi 0, %s179
      %s182 = sphi 0, %s181
      %s196 = sphi 0, %s182
      %s200 = sphi 0, %s200
      %s202 = sphi 0, %s200
      %s203 = sphi 0, %s202
      %s217 = sphi 0, %s203
      %s221 = sphi 0, %s221
      %s223 = sphi 0, %s221
      %s224 = sphi 0, %s223
      %s238 = sphi 0, %s224
      %s242 = sphi 0, %s242
      %s244 = sphi 0, %s242
      %s245 = sphi 0, %s244
      %s259 = sphi 0, %s245
      %s263 = sphi 0, %s263
      %s265 = sphi 0, %s263
      %s266 = sphi 0, %s265
      %s280 = sphi 0, %s266
      %s284 = sphi 0, %s284
      %s286 = sphi 0, %s284
      %s287 = sphi 0, %s286
      %s301 = sphi 0, %s287
      %s305 = sphi 0, %s305
      %s307 = sphi 0, %s305
      %s308 = sphi 0, %s307
      %s322 = sphi 0, %s308
      %s326 = sphi 0, %s326
      %s328 = sphi 0, %s326
      %s329 = sphi 0, %s328
      %s343 = sphi 0, %s329
      %s347 = sphi 0, %s347
      %s349 = sphi 0, %s347
      %s350 = sphi 0, %s349
      %s364 = sphi 0, %s350
      %s368 = sphi 0, %s368
      %s370 = sphi 0, %s368
      %s371 = sphi 0, %s370
      %s385 = sphi 0, %s371
      %s389 = sphi 0, %s389
      %s391 = sphi 0, %s389
      %s392 = sphi 0, %s391
      %s406 = sphi 0, %s392
      %s410 = sphi 0, %s410
      %s412 = sphi 0, %s410
      %s413 = sphi 0, %s412
      %s427 = sphi 0, %s413
      %s431 = sphi 0, %s431
      %s433 = sphi 0, %s431
      %s434 = sphi 0, %s433
      %s448 = sphi 0, %s434
      %s454 = sphi 0, %s456
      %s457 = sphi 0, %s454
      %s458 = sphi 0, %s457
      %s474 = sphi 0, %s458
      %s480 = sphi 0, %s482
      %s483 = sphi 0, %s480
      %s484 = sphi 0, %s483
      %s500 = sphi 0, %s484
    $region4: #{tpu_custom_call.1} parent=1 // loop_header_branch
      %33 = sbr.rel (%p31) target = $region8
    $region5: #{tpu_custom_call.1} parent=1 // loop_body
      %s35 = ssub.s32 %s30, 1
      %s36 = ssub.s32 %s30, 2
      %s37 = sadd.s32 %s30, 1
      %s38 = ssub.s32 %s30, %s37
      %p39 = scmp.eq.s32.totalorder %s38, 0
      %s41 = sadd.s32 %s40, 1
      %s42 = scalar_select %p39, %s40, %s41
      %p45 = pneg %p39
      %p46 = scmp.eq.s32.totalorder %s30, 1
      %p47 = por %p45, %p46
      %p48 = scmp.ne.s32.totalorder %s40, %s43
      %p49 = scmp.eq.s32.totalorder %s30, 0
      %p50 = por %p48, %p49
      %p51 = scmp.ne.s32.totalorder %s40, %s43
      %p52 = scmp.eq.s32.totalorder %s35, 1
      %p53 = por %p51, %p52
      %p54 = scmp.ne.s32.totalorder %s43, %s44
      %p55 = scmp.eq.s32.totalorder %s35, 0
      %p56 = por %p54, %p55
      %p57 = scmp.ne.s32.totalorder %s43, %s44
      %p58 = scmp.eq.s32.totalorder %s36, 1
      %p59 = por %p57, %p58
      %p61 = scmp.ne.s32.totalorder %s44, %s60
      %p62 = scmp.eq.s32.totalorder %s36, 0
      %p63 = por %p61, %p62
      %s64 = ssub.s32 %s30, %s37
      %p65 = scmp.eq.s32.totalorder %s64, 0
      %s67 = sadd.s32 %s66, 1
      %s68 = scalar_select %p65, %s66, %s67
      %p71 = pneg %p65
      %p72 = scmp.eq.s32.totalorder %s30, 1
      %p73 = por %p71, %p72
      %p74 = scmp.ne.s32.totalorder %s66, %s69
      %p75 = scmp.eq.s32.totalorder %s30, 0
      %p76 = por %p74, %p75
      %p77 = scmp.ne.s32.totalorder %s66, %s69
      %p78 = scmp.eq.s32.totalorder %s35, 1
      %p79 = por %p77, %p78
      %p80 = scmp.ne.s32.totalorder %s69, %s70
      %p81 = scmp.eq.s32.totalorder %s35, 0
      %p82 = por %p80, %p81
      %p83 = scmp.ne.s32.totalorder %s69, %s70
      %p84 = scmp.eq.s32.totalorder %s36, 1
      %p85 = por %p83, %p84
      %p87 = scmp.ne.s32.totalorder %s70, %s86
      %p88 = scmp.eq.s32.totalorder %s36, 0
      %p89 = por %p87, %p88
      %s90 = ssub.s32 %s30, %s37
      %p91 = scmp.eq.s32.totalorder %s90, 0
      %s93 = sadd.s32 %s92, 1
      %s94 = scalar_select %p91, %s92, %s93
      %p97 = pneg %p91
      %p98 = scmp.eq.s32.totalorder %s30, 1
      %p99 = por %p97, %p98
      %p100 = scmp.ne.s32.totalorder %s92, %s95
      %p101 = scmp.eq.s32.totalorder %s30, 0
      %p102 = por %p100, %p101
      %p103 = scmp.ne.s32.totalorder %s92, %s95
      %p104 = scmp.eq.s32.totalorder %s35, 1
      %p105 = por %p103, %p104
      %p106 = scmp.ne.s32.totalorder %s95, %s96
      %p107 = scmp.eq.s32.totalorder %s35, 0
      %p108 = por %p106, %p107
      %p109 = scmp.ne.s32.totalorder %s95, %s96
      %p110 = scmp.eq.s32.totalorder %s36, 1
      %p111 = por %p109, %p110
      %p113 = scmp.ne.s32.totalorder %s96, %s112
      %p114 = scmp.eq.s32.totalorder %s36, 0
      %p115 = por %p113, %p114
      %s117 = sadd.s32 %s116, 1
      %p120 = scmp.eq.s32.totalorder %s30, 1
      %p121 = scmp.ne.s32.totalorder %s116, %s118
      %p122 = scmp.eq.s32.totalorder %s30, 0
      %p123 = por %p121, %p122
      %p124 = scmp.ne.s32.totalorder %s116, %s118
      %p125 = scmp.eq.s32.totalorder %s35, 1
      %p126 = por %p124, %p125
      %p127 = scmp.ne.s32.totalorder %s118, %s119
      %p128 = scmp.eq.s32.totalorder %s35, 0
      %p129 = por %p127, %p128
      %p130 = scmp.ne.s32.totalorder %s118, %s119
      %p131 = scmp.eq.s32.totalorder %s36, 1
      %p132 = por %p130, %p131
      %p134 = scmp.ne.s32.totalorder %s119, %s133
      %p135 = scmp.eq.s32.totalorder %s36, 0
      %p136 = por %p134, %p135
      %s138 = sadd.s32 %s137, 1
      %p141 = scmp.eq.s32.totalorder %s30, 1
      %p142 = scmp.ne.s32.totalorder %s137, %s139
      %p143 = scmp.eq.s32.totalorder %s30, 0
      %p144 = por %p142, %p143
      %p145 = scmp.ne.s32.totalorder %s137, %s139
      %p146 = scmp.eq.s32.totalorder %s35, 1
      %p147 = por %p145, %p146
      %p148 = scmp.ne.s32.totalorder %s139, %s140
      %p149 = scmp.eq.s32.totalorder %s35, 0
      %p150 = por %p148, %p149
      %p151 = scmp.ne.s32.totalorder %s139, %s140
      %p152 = scmp.eq.s32.totalorder %s36, 1
      %p153 = por %p151, %p152
      %p155 = scmp.ne.s32.totalorder %s140, %s154
      %p156 = scmp.eq.s32.totalorder %s36, 0
      %p157 = por %p155, %p156
      %s159 = sadd.s32 %s158, 1
      %p162 = scmp.eq.s32.totalorder %s30, 1
      %p163 = scmp.ne.s32.totalorder %s158, %s160
      %p164 = scmp.eq.s32.totalorder %s30, 0
      %p165 = por %p163, %p164
      %p166 = scmp.ne.s32.totalorder %s158, %s160
      %p167 = scmp.eq.s32.totalorder %s35, 1
      %p168 = por %p166, %p167
      %p169 = scmp.ne.s32.totalorder %s160, %s161
      %p170 = scmp.eq.s32.totalorder %s35, 0
      %p171 = por %p169, %p170
      %p172 = scmp.ne.s32.totalorder %s160, %s161
      %p173 = scmp.eq.s32.totalorder %s36, 1
      %p174 = por %p172, %p173
      %p176 = scmp.ne.s32.totalorder %s161, %s175
      %p177 = scmp.eq.s32.totalorder %s36, 0
      %p178 = por %p176, %p177
      %s180 = sadd.s32 %s179, 1
      %p183 = scmp.eq.s32.totalorder %s30, 1
      %p184 = scmp.ne.s32.totalorder %s179, %s181
      %p185 = scmp.eq.s32.totalorder %s30, 0
      %p186 = por %p184, %p185
      %p187 = scmp.ne.s32.totalorder %s179, %s181
      %p188 = scmp.eq.s32.totalorder %s35, 1
      %p189 = por %p187, %p188
      %p190 = scmp.ne.s32.totalorder %s181, %s182
      %p191 = scmp.eq.s32.totalorder %s35, 0
      %p192 = por %p190, %p191
      %p193 = scmp.ne.s32.totalorder %s181, %s182
      %p194 = scmp.eq.s32.totalorder %s36, 1
      %p195 = por %p193, %p194
      %p197 = scmp.ne.s32.totalorder %s182, %s196
      %p198 = scmp.eq.s32.totalorder %s36, 0
      %p199 = por %p197, %p198
      %s201 = sadd.s32 %s200, 1
      %p204 = scmp.eq.s32.totalorder %s30, 1
      %p205 = scmp.ne.s32.totalorder %s200, %s202
      %p206 = scmp.eq.s32.totalorder %s30, 0
      %p207 = por %p205, %p206
      %p208 = scmp.ne.s32.totalorder %s200, %s202
      %p209 = scmp.eq.s32.totalorder %s35, 1
      %p210 = por %p208, %p209
      %p211 = scmp.ne.s32.totalorder %s202, %s203
      %p212 = scmp.eq.s32.totalorder %s35, 0
      %p213 = por %p211, %p212
      %p214 = scmp.ne.s32.totalorder %s202, %s203
      %p215 = scmp.eq.s32.totalorder %s36, 1
      %p216 = por %p214, %p215
      %p218 = scmp.ne.s32.totalorder %s203, %s217
      %p219 = scmp.eq.s32.totalorder %s36, 0
      %p220 = por %p218, %p219
      %s222 = sadd.s32 %s221, 1
      %p225 = scmp.eq.s32.totalorder %s30, 1
      %p226 = scmp.ne.s32.totalorder %s221, %s223
      %p227 = scmp.eq.s32.totalorder %s30, 0
      %p228 = por %p226, %p227
      %p229 = scmp.ne.s32.totalorder %s221, %s223
      %p230 = scmp.eq.s32.totalorder %s35, 1
      %p231 = por %p229, %p230
      %p232 = scmp.ne.s32.totalorder %s223, %s224
      %p233 = scmp.eq.s32.totalorder %s35, 0
      %p234 = por %p232, %p233
      %p235 = scmp.ne.s32.totalorder %s223, %s224
      %p236 = scmp.eq.s32.totalorder %s36, 1
      %p237 = por %p235, %p236
      %p239 = scmp.ne.s32.totalorder %s224, %s238
      %p240 = scmp.eq.s32.totalorder %s36, 0
      %p241 = por %p239, %p240
      %s243 = sadd.s32 %s242, 1
      %p246 = scmp.eq.s32.totalorder %s30, 1
      %p247 = scmp.ne.s32.totalorder %s242, %s244
      %p248 = scmp.eq.s32.totalorder %s30, 0
      %p249 = por %p247, %p248
      %p250 = scmp.ne.s32.totalorder %s242, %s244
      %p251 = scmp.eq.s32.totalorder %s35, 1
      %p252 = por %p250, %p251
      %p253 = scmp.ne.s32.totalorder %s244, %s245
      %p254 = scmp.eq.s32.totalorder %s35, 0
      %p255 = por %p253, %p254
      %p256 = scmp.ne.s32.totalorder %s244, %s245
      %p257 = scmp.eq.s32.totalorder %s36, 1
      %p258 = por %p256, %p257
      %p260 = scmp.ne.s32.totalorder %s245, %s259
      %p261 = scmp.eq.s32.totalorder %s36, 0
      %p262 = por %p260, %p261
      %s264 = sadd.s32 %s263, 1
      %p267 = scmp.eq.s32.totalorder %s30, 1
      %p268 = scmp.ne.s32.totalorder %s263, %s265
      %p269 = scmp.eq.s32.totalorder %s30, 0
      %p270 = por %p268, %p269
      %p271 = scmp.ne.s32.totalorder %s263, %s265
      %p272 = scmp.eq.s32.totalorder %s35, 1
      %p273 = por %p271, %p272
      %p274 = scmp.ne.s32.totalorder %s265, %s266
      %p275 = scmp.eq.s32.totalorder %s35, 0
      %p276 = por %p274, %p275
      %p277 = scmp.ne.s32.totalorder %s265, %s266
      %p278 = scmp.eq.s32.totalorder %s36, 1
      %p279 = por %p277, %p278
      %p281 = scmp.ne.s32.totalorder %s266, %s280
      %p282 = scmp.eq.s32.totalorder %s36, 0
      %p283 = por %p281, %p282
      %s285 = sadd.s32 %s284, 1
      %p288 = scmp.eq.s32.totalorder %s30, 1
      %p289 = scmp.ne.s32.totalorder %s284, %s286
      %p290 = scmp.eq.s32.totalorder %s30, 0
      %p291 = por %p289, %p290
      %p292 = scmp.ne.s32.totalorder %s284, %s286
      %p293 = scmp.eq.s32.totalorder %s35, 1
      %p294 = por %p292, %p293
      %p295 = scmp.ne.s32.totalorder %s286, %s287
      %p296 = scmp.eq.s32.totalorder %s35, 0
      %p297 = por %p295, %p296
      %p298 = scmp.ne.s32.totalorder %s286, %s287
      %p299 = scmp.eq.s32.totalorder %s36, 1
      %p300 = por %p298, %p299
      %p302 = scmp.ne.s32.totalorder %s287, %s301
      %p303 = scmp.eq.s32.totalorder %s36, 0
      %p304 = por %p302, %p303
      %s306 = sadd.s32 %s305, 1
      %p309 = scmp.eq.s32.totalorder %s30, 1
      %p310 = scmp.ne.s32.totalorder %s305, %s307
      %p311 = scmp.eq.s32.totalorder %s30, 0
      %p312 = por %p310, %p311
      %p313 = scmp.ne.s32.totalorder %s305, %s307
      %p314 = scmp.eq.s32.totalorder %s35, 1
      %p315 = por %p313, %p314
      %p316 = scmp.ne.s32.totalorder %s307, %s308
      %p317 = scmp.eq.s32.totalorder %s35, 0
      %p318 = por %p316, %p317
      %p319 = scmp.ne.s32.totalorder %s307, %s308
      %p320 = scmp.eq.s32.totalorder %s36, 1
      %p321 = por %p319, %p320
      %p323 = scmp.ne.s32.totalorder %s308, %s322
      %p324 = scmp.eq.s32.totalorder %s36, 0
      %p325 = por %p323, %p324
      %s327 = sadd.s32 %s326, 1
      %p330 = scmp.eq.s32.totalorder %s30, 1
      %p331 = scmp.ne.s32.totalorder %s326, %s328
      %p332 = scmp.eq.s32.totalorder %s30, 0
      %p333 = por %p331, %p332
      %p334 = scmp.ne.s32.totalorder %s326, %s328
      %p335 = scmp.eq.s32.totalorder %s35, 1
      %p336 = por %p334, %p335
      %p337 = scmp.ne.s32.totalorder %s328, %s329
      %p338 = scmp.eq.s32.totalorder %s35, 0
      %p339 = por %p337, %p338
      %p340 = scmp.ne.s32.totalorder %s328, %s329
      %p341 = scmp.eq.s32.totalorder %s36, 1
      %p342 = por %p340, %p341
      %p344 = scmp.ne.s32.totalorder %s329, %s343
      %p345 = scmp.eq.s32.totalorder %s36, 0
      %p346 = por %p344, %p345
      %s348 = sadd.s32 %s347, 1
      %p351 = scmp.eq.s32.totalorder %s30, 1
      %p352 = scmp.ne.s32.totalorder %s347, %s349
      %p353 = scmp.eq.s32.totalorder %s30, 0
      %p354 = por %p352, %p353
      %p355 = scmp.ne.s32.totalorder %s347, %s349
      %p356 = scmp.eq.s32.totalorder %s35, 1
      %p357 = por %p355, %p356
      %p358 = scmp.ne.s32.totalorder %s349, %s350
      %p359 = scmp.eq.s32.totalorder %s35, 0
      %p360 = por %p358, %p359
      %p361 = scmp.ne.s32.totalorder %s349, %s350
      %p362 = scmp.eq.s32.totalorder %s36, 1
      %p363 = por %p361, %p362
      %p365 = scmp.ne.s32.totalorder %s350, %s364
      %p366 = scmp.eq.s32.totalorder %s36, 0
      %p367 = por %p365, %p366
      %s369 = sadd.s32 %s368, 1
      %p372 = scmp.eq.s32.totalorder %s30, 1
      %p373 = scmp.ne.s32.totalorder %s368, %s370
      %p374 = scmp.eq.s32.totalorder %s30, 0
      %p375 = por %p373, %p374
      %p376 = scmp.ne.s32.totalorder %s368, %s370
      %p377 = scmp.eq.s32.totalorder %s35, 1
      %p378 = por %p376, %p377
      %p379 = scmp.ne.s32.totalorder %s370, %s371
      %p380 = scmp.eq.s32.totalorder %s35, 0
      %p381 = por %p379, %p380
      %p382 = scmp.ne.s32.totalorder %s370, %s371
      %p383 = scmp.eq.s32.totalorder %s36, 1
      %p384 = por %p382, %p383
      %p386 = scmp.ne.s32.totalorder %s371, %s385
      %p387 = scmp.eq.s32.totalorder %s36, 0
      %p388 = por %p386, %p387
      %s390 = sadd.s32 %s389, 1
      %p393 = scmp.eq.s32.totalorder %s30, 1
      %p394 = scmp.ne.s32.totalorder %s389, %s391
      %p395 = scmp.eq.s32.totalorder %s30, 0
      %p396 = por %p394, %p395
      %p397 = scmp.ne.s32.totalorder %s389, %s391
      %p398 = scmp.eq.s32.totalorder %s35, 1
      %p399 = por %p397, %p398
      %p400 = scmp.ne.s32.totalorder %s391, %s392
      %p401 = scmp.eq.s32.totalorder %s35, 0
      %p402 = por %p400, %p401
      %p403 = scmp.ne.s32.totalorder %s391, %s392
      %p404 = scmp.eq.s32.totalorder %s36, 1
      %p405 = por %p403, %p404
      %p407 = scmp.ne.s32.totalorder %s392, %s406
      %p408 = scmp.eq.s32.totalorder %s36, 0
      %p409 = por %p407, %p408
      %s411 = sadd.s32 %s410, 1
      %p414 = scmp.eq.s32.totalorder %s30, 1
      %p415 = scmp.ne.s32.totalorder %s410, %s412
      %p416 = scmp.eq.s32.totalorder %s30, 0
      %p417 = por %p415, %p416
      %p418 = scmp.ne.s32.totalorder %s410, %s412
      %p419 = scmp.eq.s32.totalorder %s35, 1
      %p420 = por %p418, %p419
      %p421 = scmp.ne.s32.totalorder %s412, %s413
      %p422 = scmp.eq.s32.totalorder %s35, 0
      %p423 = por %p421, %p422
      %p424 = scmp.ne.s32.totalorder %s412, %s413
      %p425 = scmp.eq.s32.totalorder %s36, 1
      %p426 = por %p424, %p425
      %p428 = scmp.ne.s32.totalorder %s413, %s427
      %p429 = scmp.eq.s32.totalorder %s36, 0
      %p430 = por %p428, %p429
      %s432 = sadd.s32 %s431, 1
      %p435 = scmp.eq.s32.totalorder %s30, 1
      %p436 = scmp.ne.s32.totalorder %s431, %s433
      %p437 = scmp.eq.s32.totalorder %s30, 0
      %p438 = por %p436, %p437
      %p439 = scmp.ne.s32.totalorder %s431, %s433
      %p440 = scmp.eq.s32.totalorder %s35, 1
      %p441 = por %p439, %p440
      %p442 = scmp.ne.s32.totalorder %s433, %s434
      %p443 = scmp.eq.s32.totalorder %s35, 0
      %p444 = por %p442, %p443
      %p445 = scmp.ne.s32.totalorder %s433, %s434
      %p446 = scmp.eq.s32.totalorder %s36, 1
      %p447 = por %p445, %p446
      %p449 = scmp.ne.s32.totalorder %s434, %s448
      %p450 = scmp.eq.s32.totalorder %s36, 0
      %p451 = por %p449, %p450
      %s452 = ssub.s32 %s30, %s37
      %p453 = scmp.eq.s32.totalorder %s452, 0
      %s455 = sadd.s32 %s454, 1
      %s456 = scalar_select %p453, %s454, %s455
      %p459 = pneg %p453
      %p460 = scmp.eq.s32.totalorder %s30, 1
      %p461 = por %p459, %p460
      %p462 = scmp.ne.s32.totalorder %s454, %s457
      %p463 = scmp.eq.s32.totalorder %s30, 0
      %p464 = por %p462, %p463
      %p465 = scmp.ne.s32.totalorder %s454, %s457
      %p466 = scmp.eq.s32.totalorder %s35, 1
      %p467 = por %p465, %p466
      %p468 = scmp.ne.s32.totalorder %s457, %s458
      %p469 = scmp.eq.s32.totalorder %s35, 0
      %p470 = por %p468, %p469
      %p471 = scmp.ne.s32.totalorder %s457, %s458
      %p472 = scmp.eq.s32.totalorder %s36, 1
      %p473 = por %p471, %p472
      %p475 = scmp.ne.s32.totalorder %s458, %s474
      %p476 = scmp.eq.s32.totalorder %s36, 0
      %p477 = por %p475, %p476
      %s478 = ssub.s32 %s30, %s37
      %p479 = scmp.eq.s32.totalorder %s478, 0
      %s481 = sadd.s32 %s480, 1
      %s482 = scalar_select %p479, %s480, %s481
      %p485 = pneg %p479
      %p486 = scmp.eq.s32.totalorder %s30, 1
      %p487 = por %p485, %p486
      %p488 = scmp.ne.s32.totalorder %s480, %s483
      %p489 = scmp.eq.s32.totalorder %s30, 0
      %p490 = por %p488, %p489
      %p491 = scmp.ne.s32.totalorder %s480, %s483
      %p492 = scmp.eq.s32.totalorder %s35, 1
      %p493 = por %p491, %p492
      %p494 = scmp.ne.s32.totalorder %s483, %s484
      %p495 = scmp.eq.s32.totalorder %s35, 0
      %p496 = por %p494, %p495
      %p497 = scmp.ne.s32.totalorder %s483, %s484
      %p498 = scmp.eq.s32.totalorder %s36, 1
      %p499 = por %p497, %p498
      %p501 = scmp.ne.s32.totalorder %s484, %s500
      %p502 = scmp.eq.s32.totalorder %s36, 0
      %p503 = por %p501, %p502
      %p504 = scmp.le.s32.totalorder 1, %s30
      %p505 = scmp.lt.s32.totalorder %s30, 3
      %p506 = pnand %p504, %p505
      %p507 = pneg %p506
      // Predicated region
      $region9: #{tpu_custom_call.1} parent=5 // pred_check
        _
      $region10: #{tpu_custom_call.1} parent=5 // pred_check_branch
        %509 = sbr.rel (%p506) target = $region12
      $region11: #{tpu_custom_call.1} parent=5 // pred_region
        %s510 = ssub.s32 %s30, 1
        // Predicated region
        $region13: #{tpu_custom_call.1} parent=11 // pred_check
          %p511 = pneg %p129
        $region14: #{tpu_custom_call.1} parent=11 // pred_check_branch
          %513 = sbr.rel (%p511) target = $region16
        $region15: #{tpu_custom_call.1} parent=11 // pred_region
          _
        $region16: #{tpu_custom_call.1} parent=11 // pred_fallthru
          _
        // Predicated region
        $region17: #{tpu_custom_call.1} parent=11 // pred_check
          %p514 = pneg %p150
        $region18: #{tpu_custom_call.1} parent=11 // pred_check_branch
          %516 = sbr.rel (%p514) target = $region20
        $region19: #{tpu_custom_call.1} parent=11 // pred_region
          _
        $region20: #{tpu_custom_call.1} parent=11 // pred_fallthru
          _
        // Predicated region
        $region21: #{tpu_custom_call.1} parent=11 // pred_check
          %p517 = pneg %p171
        $region22: #{tpu_custom_call.1} parent=11 // pred_check_branch
          %519 = sbr.rel (%p517) target = $region24
        $region23: #{tpu_custom_call.1} parent=11 // pred_region
          _
        $region24: #{tpu_custom_call.1} parent=11 // pred_fallthru
          _
        // Predicated region
        $region25: #{tpu_custom_call.1} parent=11 // pred_check
          %p520 = pneg %p192
        $region26: #{tpu_custom_call.1} parent=11 // pred_check_branch
          %522 = sbr.rel (%p520) target = $region28
        $region27: #{tpu_custom_call.1} parent=11 // pred_region
          _
        $region28: #{tpu_custom_call.1} parent=11 // pred_fallthru
          _
        // Predicated region
        $region29: #{tpu_custom_call.1} parent=11 // pred_check
          %p523 = pneg %p213
        $region30: #{tpu_custom_call.1} parent=11 // pred_check_branch
          %525 = sbr.rel (%p523) target = $region32
        $region31: #{tpu_custom_call.1} parent=11 // pred_region
          _
        $region32: #{tpu_custom_call.1} parent=11 // pred_fallthru
          _
        // Predicated region
        $region33: #{tpu_custom_call.1} parent=11 // pred_check
          %p526 = pneg %p234
        $region34: #{tpu_custom_call.1} parent=11 // pred_check_branch
          %528 = sbr.rel (%p526) target = $region36
        $region35: #{tpu_custom_call.1} parent=11 // pred_region
          _
        $region36: #{tpu_custom_call.1} parent=11 // pred_fallthru
          _
        // Predicated region
        $region37: #{tpu_custom_call.1} parent=11 // pred_check
          %p529 = pneg %p255
        $region38: #{tpu_custom_call.1} parent=11 // pred_check_branch
          %531 = sbr.rel (%p529) target = $region40
        $region39: #{tpu_custom_call.1} parent=11 // pred_region
          _
        $region40: #{tpu_custom_call.1} parent=11 // pred_fallthru
          _
        // Predicated region
        $region41: #{tpu_custom_call.1} parent=11 // pred_check
          %p532 = pneg %p276
        $region42: #{tpu_custom_call.1} parent=11 // pred_check_branch
          %534 = sbr.rel (%p532) target = $region44
        $region43: #{tpu_custom_call.1} parent=11 // pred_region
          _
        $region44: #{tpu_custom_call.1} parent=11 // pred_fallthru
          _
        // Predicated region
        $region45: #{tpu_custom_call.1} parent=11 // pred_check
          %p535 = pneg %p297
        $region46: #{tpu_custom_call.1} parent=11 // pred_check_branch
          %537 = sbr.rel (%p535) target = $region48
        $region47: #{tpu_custom_call.1} parent=11 // pred_region
          _
        $region48: #{tpu_custom_call.1} parent=11 // pred_fallthru
          _
        // Predicated region
        $region49: #{tpu_custom_call.1} parent=11 // pred_check
          %p538 = pneg %p318
        $region50: #{tpu_custom_call.1} parent=11 // pred_check_branch
          %540 = sbr.rel (%p538) target = $region52
        $region51: #{tpu_custom_call.1} parent=11 // pred_region
          _
        $region52: #{tpu_custom_call.1} parent=11 // pred_fallthru
          _
        // Predicated region
        $region53: #{tpu_custom_call.1} parent=11 // pred_check
          %p541 = pneg %p339
        $region54: #{tpu_custom_call.1} parent=11 // pred_check_branch
          %543 = sbr.rel (%p541) target = $region56
        $region55: #{tpu_custom_call.1} parent=11 // pred_region
          _
        $region56: #{tpu_custom_call.1} parent=11 // pred_fallthru
          _
        // Predicated region
        $region57: #{tpu_custom_call.1} parent=11 // pred_check
          %p544 = pneg %p360
        $region58: #{tpu_custom_call.1} parent=11 // pred_check_branch
          %546 = sbr.rel (%p544) target = $region60
        $region59: #{tpu_custom_call.1} parent=11 // pred_region
          _
        $region60: #{tpu_custom_call.1} parent=11 // pred_fallthru
          _
        // Predicated region
        $region61: #{tpu_custom_call.1} parent=11 // pred_check
          %p547 = pneg %p381
        $region62: #{tpu_custom_call.1} parent=11 // pred_check_branch
          %549 = sbr.rel (%p547) target = $region64
        $region63: #{tpu_custom_call.1} parent=11 // pred_region
          _
        $region64: #{tpu_custom_call.1} parent=11 // pred_fallthru
          _
        // Predicated region
        $region65: #{tpu_custom_call.1} parent=11 // pred_check
          %p550 = pneg %p402
        $region66: #{tpu_custom_call.1} parent=11 // pred_check_branch
          %552 = sbr.rel (%p550) target = $region68
        $region67: #{tpu_custom_call.1} parent=11 // pred_region
          _
        $region68: #{tpu_custom_call.1} parent=11 // pred_fallthru
          _
        // Predicated region
        $region69: #{tpu_custom_call.1} parent=11 // pred_check
          %p553 = pneg %p423
        $region70: #{tpu_custom_call.1} parent=11 // pred_check_branch
          %555 = sbr.rel (%p553) target = $region72
        $region71: #{tpu_custom_call.1} parent=11 // pred_region
          _
        $region72: #{tpu_custom_call.1} parent=11 // pred_fallthru
          _
        // Predicated region
        $region73: #{tpu_custom_call.1} parent=11 // pred_check
          %p556 = pneg %p444
        $region74: #{tpu_custom_call.1} parent=11 // pred_check_branch
          %558 = sbr.rel (%p556) target = $region76
        $region75: #{tpu_custom_call.1} parent=11 // pred_region
          _
        $region76: #{tpu_custom_call.1} parent=11 // pred_fallthru
          _
      $region12: #{tpu_custom_call.1} parent=5 // pred_fallthru
        _
      %p559 = scmp.lt.s32.totalorder %s30, 2
      // Predicated region
      $region77: #{tpu_custom_call.1} parent=5 // pred_check
        %p560 = pneg %p559
      $region78: #{tpu_custom_call.1} parent=5 // pred_check_branch
        %562 = sbr.rel (%p560) target = $region80
      $region79: #{tpu_custom_call.1} parent=5 // pred_region
        // Predicated region
        $region81: #{tpu_custom_call.1} parent=79 // pred_check
          %p563 = pneg %p50
        $region82: #{tpu_custom_call.1} parent=79 // pred_check_branch
          %565 = sbr.rel (%p563) target = $region84
        $region83: #{tpu_custom_call.1} parent=79 // pred_region
          %p566 = scmp.lt.s32.totalorder %s30, 1
          %s567 = scalar_select %p566, %s30, 1
          %s568 = smul.addr %s567, 8
          %s569 = scalar_lea.vmem %s0, %s568
        $region84: #{tpu_custom_call.1} parent=79 // pred_fallthru
          _
        // Predicated region
        $region85: #{tpu_custom_call.1} parent=79 // pred_check
          %p570 = pneg %p76
        $region86: #{tpu_custom_call.1} parent=79 // pred_check_branch
          %572 = sbr.rel (%p570) target = $region88
        $region87: #{tpu_custom_call.1} parent=79 // pred_region
          %p573 = scmp.lt.s32.totalorder %s30, 1
          %s574 = scalar_select %p573, %s30, 1
          %s575 = scalar_lea.vmem %s1, %s574
        $region88: #{tpu_custom_call.1} parent=79 // pred_fallthru
          _
        // Predicated region
        $region89: #{tpu_custom_call.1} parent=79 // pred_check
          %p576 = pneg %p102
        $region90: #{tpu_custom_call.1} parent=79 // pred_check_branch
          %578 = sbr.rel (%p576) target = $region92
        $region91: #{tpu_custom_call.1} parent=79 // pred_region
          %p579 = scmp.lt.s32.totalorder %s30, 1
          %s580 = scalar_select %p579, %s30, 1
          %s581 = scalar_lea.vmem %s2, %s580
        $region92: #{tpu_custom_call.1} parent=79 // pred_fallthru
          _
      $region80: #{tpu_custom_call.1} parent=5 // pred_fallthru
        _
      %p582 = scmp.le.s32.totalorder 1, %s30
      %p583 = scmp.lt.s32.totalorder %s30, 3
      %p584 = pnand %p582, %p583
      %p585 = pneg %p584
      // Predicated region
      $region93: #{tpu_custom_call.1} parent=5 // pred_check
        _
      $region94: #{tpu_custom_call.1} parent=5 // pred_check_branch
        %587 = sbr.rel (%p584) target = $region96
      $region95: #{tpu_custom_call.1} parent=5 // pred_region
        %s588 = ssub.s32 %s30, 1
        %p589 = scmp.lt.s32.totalorder %s35, 1
        %s590 = scalar_select %p589, %s35, 1
        %s591 = smul.addr %s590, 8
        %s592 = scalar_lea.vmem %s0, %s591
        %p593 = pneg %p56
        %p594 = pneg %p53
        %p595 = scmp.lt.s32.totalorder %s35, 1
        %s596 = scalar_select %p595, %s35, 1
        %s597 = scalar_lea.vmem %s1, %s596
        %p598 = pneg %p82
        %p599 = pneg %p79
        %p600 = scmp.lt.s32.totalorder %s35, 1
        %s601 = scalar_select %p600, %s35, 1
        %s602 = scalar_lea.vmem %s2, %s601
        %p603 = pneg %p108
        %p604 = pneg %p105
        %p605 = pneg %p129
        %p606 = pneg %p126
        %p607 = pneg %p150
        %p608 = pneg %p147
        %p609 = pneg %p171
        %p610 = pneg %p168
        %p611 = pneg %p192
        %p612 = pneg %p189
        %p613 = pneg %p213
        %p614 = pneg %p210
        %p615 = pneg %p234
        %p616 = pneg %p231
        %p617 = pneg %p255
        %p618 = pneg %p252
        %p619 = pneg %p276
        %p620 = pneg %p273
        %p621 = pneg %p297
        %p622 = pneg %p294
        %p623 = pneg %p318
        %p624 = pneg %p315
        %p625 = pneg %p339
        %p626 = pneg %p336
        %p627 = pneg %p360
        %p628 = pneg %p357
        %p629 = pneg %p381
        %p630 = pneg %p378
        %p631 = pneg %p402
        %p632 = pneg %p399
        %p633 = pneg %p423
        %p634 = pneg %p420
        %p635 = pneg %p444
        %p636 = pneg %p441
        %p637 = pneg %p470
        %p638 = pneg %p467
        %s639 = sand.u32 %s457, 1
        %s640 = scalar_lea.sflag [#allocation3], %s639
        %s641 = sand.u32 %s457, 1
        %s642 = scalar_lea.vmem [#allocation2], %s641
        %p643 = pneg %p496
        %p644 = pneg %p493
        %p645 = scmp.lt.s32.totalorder %s35, 1
        %s646 = scalar_select %p645, %s35, 1
        %s647 = scalar_lea.vmem %s20, %s646
        %p648 = scmp.lt.s32.totalorder %s35, 1
        %s649 = scalar_select %p648, %s35, 1
        %s650 = smul.addr %s649, 8
        %s651 = scalar_lea.vmem %s0, %s650
        %p652 = scmp.lt.s32.totalorder %s35, 1
        %s653 = scalar_select %p652, %s35, 1
        %s654 = scalar_lea.vmem %s1, %s653
        %p655 = scmp.lt.s32.totalorder %s35, 1
        %s656 = scalar_select %p655, %s35, 1
        %s657 = scalar_lea.vmem %s2, %s656
        %p658 = scmp.lt.s32.totalorder %s35, 1
        %s659 = scalar_select %p658, %s35, 1
        %s660 = scalar_lea.vmem %s20, %s659
        %v662 = vld [vmem:[%s651] sm:$0xff]
        %v663 = vld [vmem:[%s3] sm:$0x1]
        %v664 = vld [vmem:[%s4] sm:$0x1]
        %vm665 = vcmask 261120
        %v666 = vsel %vm665, %v662, 0.0
        %667 = vadd.xlane.f32.xlu0 %v666
        %v668 = vpop.xlane.xlu0 %667
        %v669 = vrcp.pop 32.0
        %v670 = vmul.f32 32.0, %v669
        %v671 = vsub.f32 1.0, %v670
        %v672 = vmul.f32 %v669, %v671
        %v673 = vadd.f32 %v669, %v672
        %vm674 = vweird.f32 %v669
        %v675 = vsel %vm674, %v669, %v673
        %v676 = vmul.f32 %v668, %v675
        %v677 = vsub.f32 %v662, %v676
        %v678 = vmul.f32 %v677, %v677
        %v679 = vsel %vm665, %v678, 0.0
        %680 = vadd.xlane.f32.xlu0 %v679
        %v681 = vpop.xlane.xlu0 %680
        %v682 = vmul.f32 %v681, %v675
        %v683 = vadd.f32 %v682, 1e-12
        %v684 = vrsqrt.pop %v683
        %v685 = vmul.f32 %v684, %v683
        %v686 = vmul.f32 %v685, %v684
        %v687 = vmul.f32 0.5, %v686
        %v688 = vsub.f32 1.5, %v687
        %v689 = vmul.f32 %v684, %v688
        %vm690 = vweird.f32 %v683
        %vm691 = vweird.f32 %v684
        %vm692 = vmor %vm690, %vm691
        %v693 = vsel %vm692, %v684, %v689
        %v694 = vmul.f32 %v677, %v693
        %v696 = vperm.slane %v663, 0
        %v698 = vmul.f32 %v694, %v696
        %v700 = vperm.slane %v664, 0
        %v702 = vadd.f32 %v698, %v700
        %v703 = vld [vmem:[%s654] sm:$0x1]
        %v704 = vsub.f32 1.0, %v703
        %v705 = vmul.f32 %v704, -1e+09
        %v706 = vld [vmem:[%s5] sm:$0xf]
        %v707 = vld [vmem:[%s5 + $0x4] sm:$0xf]
        %v708 = vld [vmem:[%s5 + $0x8] sm:$0xf]
        %v709 = vld [vmem:[%s5 + $0xc] sm:$0xf]
        %v710 = vld [vmem:[%s5 + $0x10] sm:$0xf]
        %v711 = vld [vmem:[%s5 + $0x14] sm:$0xf]
        %v712 = vld [vmem:[%s5 + $0x18] sm:$0xf]
        %v713 = vld [vmem:[%s5 + $0x1c] sm:$0xf]
        %v714 = vld [vmem:[%s5 + $0x20] sm:$0xf]
        %v715 = vld [vmem:[%s5 + $0x24] sm:$0xf]
        %v716 = vld [vmem:[%s5 + $0x28] sm:$0xf]
        %v717 = vld [vmem:[%s5 + $0x2c] sm:$0xf]
        %v718 = vld [vmem:[%s5 + $0x30] sm:$0xf]
        %v719 = vld [vmem:[%s5 + $0x34] sm:$0xf]
        %v720 = vld [vmem:[%s5 + $0x38] sm:$0xf]
        %v721 = vld [vmem:[%s5 + $0x3c] sm:$0xf]
        %v722 = vld [vmem:[%s5 + $0x40] sm:$0xf]
        %v723 = vld [vmem:[%s5 + $0x44] sm:$0xf]
        %v724 = vld [vmem:[%s5 + $0x48] sm:$0xf]
        %v725 = vld [vmem:[%s5 + $0x4c] sm:$0xf]
        %v726 = vld [vmem:[%s5 + $0x50] sm:$0xf]
        %v727 = vld [vmem:[%s5 + $0x54] sm:$0xf]
        %v728 = vld [vmem:[%s5 + $0x58] sm:$0xf]
        %v729 = vld [vmem:[%s5 + $0x5c] sm:$0xf]
        %v730 = vld [vmem:[%s6] sm:$0x1]
        %v731 = vld [vmem:[%s6 + $0x1] sm:$0x1]
        %v732 = vld [vmem:[%s6 + $0x2] sm:$0x1]
        %v733 = vld [vmem:[%s6 + $0x3] sm:$0x1]
        %v734 = vld [vmem:[%s6 + $0x4] sm:$0x1]
        %v735 = vld [vmem:[%s6 + $0x5] sm:$0x1]
        %v736 = vpack.c.bf16 %v702, %v702
        %v739 = vperm.slane %v730, 0
        %v740 = vperm.slane %v731, 0
        %v747 = vunpack.c.l.b16 %v706
        %v748 = vunpack.c.l.b16 %v707
        %v749 = vunpack.c.l.b16 %v708
        %v750 = vunpack.c.l.b16 %v709
        %v751 = vpack.c.b16 %v748, %v747
        %v752 = vpack.c.b16 %v750, %v749
        %v756 = vsel %vm665, %v736, 0
        %758 = vmatpush.bf16.msra.mxu0 0
        %759 = vmatpush.bf16.msra.mxu0 0
        %760 = vmatpush.bf16.msra.mxu0 0
        %761 = vmatpush.bf16.msra.mxu0 0
        %762 = vmatpush.bf16.msra.mxu0 0
        %763 = vmatpush.bf16.msra.mxu0 0
        %764 = vmatpush.bf16.msra.mxu0 %v752
        %765 = vmatpush.bf16.msra.mxu0 %v751
        %766 = vmatmul.bf16.gmra.mxu0 %v756
        %v767 = vpop.f32.mrf.mxu0
        %v768 = vadd.f32 %v739, %v767
        %v769 = vpop.f32.mrf.mxu0
        %770 = vdwg.mxu0
        %v775 = vunpack.c.l.b16 %v710
        %v776 = vunpack.c.l.b16 %v711
        %v777 = vunpack.c.l.b16 %v712
        %v778 = vunpack.c.l.b16 %v713
        %v779 = vpack.c.b16 %v776, %v775
        %v780 = vpack.c.b16 %v778, %v777
        %783 = vmatpush.bf16.msra.mxu0 0
        %784 = vmatpush.bf16.msra.mxu0 0
        %785 = vmatpush.bf16.msra.mxu0 0
        %786 = vmatpush.bf16.msra.mxu0 0
        %787 = vmatpush.bf16.msra.mxu0 0
        %788 = vmatpush.bf16.msra.mxu0 0
        %789 = vmatpush.bf16.msra.mxu0 %v780
        %790 = vmatpush.bf16.msra.mxu0 %v779
        %791 = vmatmul.bf16.gmra.mxu0 %v756
        %v792 = vpop.f32.mrf.mxu0
        %v793 = vadd.f32 %v740, %v792
        %v794 = vpop.f32.mrf.mxu0
        %795 = vdwg.mxu0
        %v798 = vperm.slane %v732, 0
        %v799 = vperm.slane %v733, 0
        %v806 = vunpack.c.l.b16 %v714
        %v807 = vunpack.c.l.b16 %v715
        %v808 = vunpack.c.l.b16 %v716
        %v809 = vunpack.c.l.b16 %v717
        %v810 = vpack.c.b16 %v807, %v806
        %v811 = vpack.c.b16 %v809, %v808
        %814 = vmatpush.bf16.msra.mxu0 0
        %815 = vmatpush.bf16.msra.mxu0 0
        %816 = vmatpush.bf16.msra.mxu0 0
        %817 = vmatpush.bf16.msra.mxu0 0
        %818 = vmatpush.bf16.msra.mxu0 0
        %819 = vmatpush.bf16.msra.mxu0 0
        %820 = vmatpush.bf16.msra.mxu0 %v811
        %821 = vmatpush.bf16.msra.mxu0 %v810
        %822 = vmatmul.bf16.gmra.mxu0 %v756
        %v823 = vpop.f32.mrf.mxu0
        %v824 = vadd.f32 %v798, %v823
        %v825 = vpop.f32.mrf.mxu0
        %826 = vdwg.mxu0
        %v831 = vunpack.c.l.b16 %v718
        %v832 = vunpack.c.l.b16 %v719
        %v833 = vunpack.c.l.b16 %v720
        %v834 = vunpack.c.l.b16 %v721
        %v835 = vpack.c.b16 %v832, %v831
        %v836 = vpack.c.b16 %v834, %v833
        %839 = vmatpush.bf16.msra.mxu0 0
        %840 = vmatpush.bf16.msra.mxu0 0
        %841 = vmatpush.bf16.msra.mxu0 0
        %842 = vmatpush.bf16.msra.mxu0 0
        %843 = vmatpush.bf16.msra.mxu0 0
        %844 = vmatpush.bf16.msra.mxu0 0
        %845 = vmatpush.bf16.msra.mxu0 %v836
        %846 = vmatpush.bf16.msra.mxu0 %v835
        %847 = vmatmul.bf16.gmra.mxu0 %v756
        %v848 = vpop.f32.mrf.mxu0
        %v849 = vadd.f32 %v799, %v848
        %v850 = vpop.f32.mrf.mxu0
        %851 = vdwg.mxu0
        %v854 = vperm.slane %v734, 0
        %v855 = vperm.slane %v735, 0
        %v862 = vunpack.c.l.b16 %v722
        %v863 = vunpack.c.l.b16 %v723
        %v864 = vunpack.c.l.b16 %v724
        %v865 = vunpack.c.l.b16 %v725
        %v866 = vpack.c.b16 %v863, %v862
        %v867 = vpack.c.b16 %v865, %v864
        %870 = vmatpush.bf16.msra.mxu0 0
        %871 = vmatpush.bf16.msra.mxu0 0
        %872 = vmatpush.bf16.msra.mxu0 0
        %873 = vmatpush.bf16.msra.mxu0 0
        %874 = vmatpush.bf16.msra.mxu0 0
        %875 = vmatpush.bf16.msra.mxu0 0
        %876 = vmatpush.bf16.msra.mxu0 %v867
        %877 = vmatpush.bf16.msra.mxu0 %v866
        %878 = vmatmul.bf16.gmra.mxu0 %v756
        %v879 = vpop.f32.mrf.mxu0
        %v880 = vadd.f32 %v854, %v879
        %v881 = vpop.f32.mrf.mxu0
        %882 = vdwg.mxu0
        %v887 = vunpack.c.l.b16 %v726
        %v888 = vunpack.c.l.b16 %v727
        %v889 = vunpack.c.l.b16 %v728
        %v890 = vunpack.c.l.b16 %v729
        %v891 = vpack.c.b16 %v888, %v887
        %v892 = vpack.c.b16 %v890, %v889
        %895 = vmatpush.bf16.msra.mxu0 0
        %896 = vmatpush.bf16.msra.mxu0 0
        %897 = vmatpush.bf16.msra.mxu0 0
        %898 = vmatpush.bf16.msra.mxu0 0
        %899 = vmatpush.bf16.msra.mxu0 0
        %900 = vmatpush.bf16.msra.mxu0 0
        %901 = vmatpush.bf16.msra.mxu0 %v892
        %902 = vmatpush.bf16.msra.mxu0 %v891
        %903 = vmatmul.bf16.gmra.mxu0 %v756
        %v904 = vpop.f32.mrf.mxu0
        %v905 = vadd.f32 %v855, %v904
        %v906 = vpop.f32.mrf.mxu0
        %907 = vdwg.mxu0
        %v908 = vpack.c.bf16 %v768, %v768
        %v909 = vpack.c.bf16 %v793, %v793
        %v910 = vpack.c.bf16 %v824, %v824
        %v911 = vpack.c.bf16 %v849, %v849
        %vm912 = vcmask 130048
        %v914 = vsel %vm912, %v908, 0
        %v917 = vsel %vm912, %v910, 0
        %919 = vmatpush.bf16.xpose.msra.mxu0 0
        %920 = vmatpush.bf16.xpose.msra.mxu0 0
        %921 = vmatpush.bf16.xpose.msra.mxu0 0
        %922 = vmatpush.bf16.xpose.msra.mxu0 0
        %923 = vmatpush.bf16.xpose.msra.mxu0 0
        %924 = vmatpush.bf16.xpose.msra.mxu0 0
        %925 = vmatpush.bf16.xpose.msra.mxu0 0
        %926 = vmatpush.bf16.xpose.msra.mxu0 %v917
        %927 = vmatmul.bf16.gmra.mxu0 %v914
        %v928 = vpop.f32.mrf.mxu0
        %v929 = vadd.f32 0.0, %v928
        %v930 = vpop.f32.mrf.mxu0
        %931 = vdwg.mxu0
        %v933 = vsel %vm912, %v909, 0
        %v936 = vsel %vm912, %v911, 0
        %938 = vmatpush.bf16.xpose.msra.mxu0 0
        %939 = vmatpush.bf16.xpose.msra.mxu0 0
        %940 = vmatpush.bf16.xpose.msra.mxu0 0
        %941 = vmatpush.bf16.xpose.msra.mxu0 0
        %942 = vmatpush.bf16.xpose.msra.mxu0 0
        %943 = vmatpush.bf16.xpose.msra.mxu0 0
        %944 = vmatpush.bf16.xpose.msra.mxu0 0
        %945 = vmatpush.bf16.xpose.msra.mxu0 %v936
        %946 = vmatmul.bf16.gmra.mxu0 %v933
        %v947 = vpop.f32.mrf.mxu0
        %v948 = vadd.f32 0.0, %v947
        %v949 = vpop.f32.mrf.mxu0
        %950 = vdwg.mxu0
        %v951 = vmul.f32 %v929, 0.25
        %v952 = vmul.f32 %v948, 0.25
        %v954 = vperm.slane %v705, 0
        %v956 = vadd.f32 %v951, %v954
        %v957 = vadd.f32 %v952, %v954
        %vm958 = vcmask 64512
        %v959 = vsel %vm958, %v956, -inf
        %960 = vmax.xlane.f32.xlu0 %v959
        %v961 = vpop.xlane.xlu0 %960
        %v962 = vsel %vm958, %v957, -inf
        %963 = vmax.xlane.f32.xlu0 %v962
        %v964 = vpop.xlane.xlu0 %963
        %v965 = vsub.f32 %v956, %v961
        %v966 = vsub.f32 %v957, %v964
        %v967 = vmul.f32 %v965, 1.442695
        %v968 = vpow.pop %v967
        %v969 = vmul.f32 %v966, 1.442695
        %v970 = vpow.pop %v969
        %v971 = vsel %vm958, %v968, 0.0
        %972 = vadd.xlane.f32.xlu0 %v971
        %v973 = vpop.xlane.xlu0 %972
        %v974 = vsel %vm958, %v970, 0.0
        %975 = vadd.xlane.f32.xlu0 %v974
        %v976 = vpop.xlane.xlu0 %975
        %v977 = vrcp.pop %v973
        %v978 = vrcp.pop %v976
        %v979 = vmul.f32 %v968, %v977
        %v980 = vmul.f32 %v970, %v978
        %v981 = vpack.c.bf16 %v979, %v979
        %v982 = vpack.c.bf16 %v980, %v980
        %v983 = vpack.c.bf16 %v880, %v880
        %v984 = vpack.c.bf16 %v905, %v905
        %v986 = vsel %vm958, %v981, 0
        %vm988 = vcmask 1043456
        %v990 = vsel %vm988, %v983, 0
        %992 = vmatpush.bf16.msra.mxu0 0
        %993 = vmatpush.bf16.msra.mxu0 0
        %994 = vmatpush.bf16.msra.mxu0 0
        %995 = vmatpush.bf16.msra.mxu0 0
        %996 = vmatpush.bf16.msra.mxu0 0
        %997 = vmatpush.bf16.msra.mxu0 0
        %998 = vmatpush.bf16.msra.mxu0 0
        %999 = vmatpush.bf16.msra.mxu0 %v990
        %1000 = vmatmul.bf16.gmra.mxu0 %v986
        %v1001 = vpop.f32.mrf.mxu0
        %v1002 = vadd.f32 0.0, %v1001
        %v1003 = vpop.f32.mrf.mxu0
        %1004 = vdwg.mxu0
        %v1006 = vsel %vm958, %v982, 0
        %v1009 = vsel %vm988, %v984, 0
        %1011 = vmatpush.bf16.msra.mxu0 0
        %1012 = vmatpush.bf16.msra.mxu0 0
        %1013 = vmatpush.bf16.msra.mxu0 0
        %1014 = vmatpush.bf16.msra.mxu0 0
        %1015 = vmatpush.bf16.msra.mxu0 0
        %1016 = vmatpush.bf16.msra.mxu0 0
        %1017 = vmatpush.bf16.msra.mxu0 0
        %1018 = vmatpush.bf16.msra.mxu0 %v1009
        %1019 = vmatmul.bf16.gmra.mxu0 %v1006
        %v1020 = vpop.f32.mrf.mxu0
        %v1021 = vadd.f32 0.0, %v1020
        %v1022 = vpop.f32.mrf.mxu0
        %1023 = vdwg.mxu0
        %v1024 = vpack.c.bf16 %v1002, %v1002
        %v1025 = vpack.c.bf16 %v1021, %v1021
        %v1026 = vld [vmem:[%s7] sm:$0xf]
        %v1027 = vld [vmem:[%s7 + $0x4] sm:$0xf]
        %v1028 = vld [vmem:[%s7 + $0x8] sm:$0xf]
        %v1029 = vld [vmem:[%s7 + $0xc] sm:$0xf]
        %v1032 = vunpack.c.l.b16 %v1026
        %v1033 = vunpack.c.l.b16 %v1027
        %v1034 = vpack.c.b16 %v1033, %v1032
        %v1037 = vsel %vm912, %v1024, 0
        %1039 = vmatpush.bf16.msra.mxu0 0
        %1040 = vmatpush.bf16.msra.mxu0 0
        %1041 = vmatpush.bf16.msra.mxu0 0
        %1042 = vmatpush.bf16.msra.mxu0 0
        %1043 = vmatpush.bf16.msra.mxu0 0
        %1044 = vmatpush.bf16.msra.mxu0 0
        %1045 = vmatpush.bf16.msra.mxu0 0
        %1046 = vmatpush.bf16.msra.mxu0 %v1034
        %1047 = vmatmul.bf16.gmra.mxu0 %v1037
        %v1048 = vpop.f32.mrf.mxu0
        %v1049 = vadd.f32 0.0, %v1048
        %v1050 = vpop.f32.mrf.mxu0
        %1051 = vdwg.mxu0
        %v1054 = vunpack.c.l.b16 %v1028
        %v1055 = vunpack.c.l.b16 %v1029
        %v1056 = vpack.c.b16 %v1055, %v1054
        %v1059 = vsel %vm912, %v1025, 0
        %1061 = vmatpush.bf16.msra.mxu0 0
        %1062 = vmatpush.bf16.msra.mxu0 0
        %1063 = vmatpush.bf16.msra.mxu0 0
        %1064 = vmatpush.bf16.msra.mxu0 0
        %1065 = vmatpush.bf16.msra.mxu0 0
        %1066 = vmatpush.bf16.msra.mxu0 0
        %1067 = vmatpush.bf16.msra.mxu0 0
        %1068 = vmatpush.bf16.msra.mxu0 %v1056
        %1069 = vmatmul.bf16.gmra.mxu0 %v1059
        %v1070 = vpop.f32.mrf.mxu0
        %v1071 = vadd.f32 0.0, %v1070
        %v1072 = vpop.f32.mrf.mxu0
        %1073 = vdwg.mxu0
        %v1074 = vsel %vm665, %v1049, 0.0
        %v1075 = vsel %vm665, %v1071, 0.0
        %v1076 = vadd.f32 %v1074, %v1075
        %v1077 = vld [vmem:[%s8] sm:$0x1]
        %v1079 = vperm.slane %v1077, 0
        %v1081 = vadd.f32 %v1076, %v1079
        %v1082 = vadd.f32 %v1081, %v702
        %v1083 = vld [vmem:[%s9] sm:$0x1]
        %v1084 = vld [vmem:[%s10] sm:$0x1]
        %v1085 = vsel %vm665, %v1082, 0.0
        %1086 = vadd.xlane.f32.xlu0 %v1085
        %v1087 = vpop.xlane.xlu0 %1086
        %v1088 = vmul.f32 %v1087, %v675
        %v1089 = vsub.f32 %v1082, %v1088
        %v1090 = vmul.f32 %v1089, %v1089
        %v1091 = vsel %vm665, %v1090, 0.0
        %1092 = vadd.xlane.f32.xlu0 %v1091
        %v1093 = vpop.xlane.xlu0 %1092
        %v1094 = vmul.f32 %v1093, %v675
        %v1095 = vadd.f32 %v1094, 1e-12
        %v1096 = vrsqrt.pop %v1095
        %v1097 = vmul.f32 %v1096, %v1095
        %v1098 = vmul.f32 %v1097, %v1096
        %v1099 = vmul.f32 0.5, %v1098
        %v1100 = vsub.f32 1.5, %v1099
        %v1101 = vmul.f32 %v1096, %v1100
        %vm1102 = vweird.f32 %v1095
        %vm1103 = vweird.f32 %v1096
        %vm1104 = vmor %vm1102, %vm1103
        %v1105 = vsel %vm1104, %v1096, %v1101
        %v1106 = vmul.f32 %v1089, %v1105
        %v1108 = vperm.slane %v1083, 0
        %v1110 = vmul.f32 %v1106, %v1108
        %v1112 = vperm.slane %v1084, 0
        %v1114 = vadd.f32 %v1110, %v1112
        %v1115 = vpack.c.bf16 %v1114, %v1114
        %v1116 = vld [vmem:[%s11] sm:$0xf]
        %v1117 = vld [vmem:[%s11 + $0x4] sm:$0xf]
        %v1118 = vld [vmem:[%s11 + $0x8] sm:$0xf]
        %v1119 = vld [vmem:[%s11 + $0xc] sm:$0xf]
        %v1120 = vld [vmem:[%s12] sm:$0x1]
        %v1122 = vperm.slane %v1120, 0
        %v1128 = vunpack.c.l.b16 %v1116
        %v1129 = vunpack.c.l.b16 %v1117
        %v1130 = vunpack.c.l.b16 %v1118
        %v1131 = vunpack.c.l.b16 %v1119
        %v1132 = vpack.c.b16 %v1129, %v1128
        %v1133 = vpack.c.b16 %v1131, %v1130
        %v1137 = vsel %vm665, %v1115, 0
        %1139 = vmatpush.bf16.msra.mxu0 0
        %1140 = vmatpush.bf16.msra.mxu0 0
        %1141 = vmatpush.bf16.msra.mxu0 0
        %1142 = vmatpush.bf16.msra.mxu0 0
        %1143 = vmatpush.bf16.msra.mxu0 0
        %1144 = vmatpush.bf16.msra.mxu0 0
        %1145 = vmatpush.bf16.msra.mxu0 %v1133
        %1146 = vmatpush.bf16.msra.mxu0 %v1132
        %1147 = vmatmul.bf16.gmra.mxu0 %v1137
        %v1148 = vpop.f32.mrf.mxu0
        %v1149 = vadd.f32 %v1122, %v1148
        %v1150 = vpop.f32.mrf.mxu0
        %1151 = vdwg.mxu0
        %v1152 = vmul.f32 %v1149, 0.5
        %v1153 = vmul.f32 %v1149, 0.044715
        %v1154 = vmul.f32 %v1153, %v1149
        %v1155 = vmul.f32 %v1154, %v1149
        %v1156 = vadd.f32 %v1149, %v1155
        %v1157 = vmul.f32 %v1156, 0.7978846
        %v1158 = vtanh.pop %v1157
        %v1159 = vadd.f32 %v1158, 1.0
        %v1160 = vmul.f32 %v1152, %v1159
        %v1161 = vpack.c.bf16 %v1160, %v1160
        %v1162 = vld [vmem:[%s13] sm:$0xf]
        %v1163 = vld [vmem:[%s13 + $0x4] sm:$0xf]
        %v1164 = vld [vmem:[%s13 + $0x8] sm:$0xf]
        %v1165 = vld [vmem:[%s13 + $0xc] sm:$0xf]
        %v1166 = vld [vmem:[%s13 + $0x10] sm:$0xf]
        %v1167 = vld [vmem:[%s13 + $0x14] sm:$0xf]
        %v1168 = vld [vmem:[%s13 + $0x18] sm:$0xf]
        %v1169 = vld [vmem:[%s13 + $0x1c] sm:$0xf]
        %v1170 = vld [vmem:[%s14] sm:$0x1]
        %v1172 = vperm.slane %v1170, 0
        %v1182 = vunpack.c.l.b16 %v1162
        %v1183 = vunpack.c.l.b16 %v1163
        %v1184 = vunpack.c.l.b16 %v1164
        %v1185 = vunpack.c.l.b16 %v1165
        %v1186 = vunpack.c.l.b16 %v1166
        %v1187 = vunpack.c.l.b16 %v1167
        %v1188 = vunpack.c.l.b16 %v1168
        %v1189 = vunpack.c.l.b16 %v1169
        %v1190 = vpack.c.b16 %v1183, %v1182
        %v1191 = vpack.c.b16 %v1185, %v1184
        %v1192 = vpack.c.b16 %v1187, %v1186
        %v1193 = vpack.c.b16 %v1189, %v1188
        %vm1198 = vcmask 523264
        %v1200 = vsel %vm1198, %v1161, 0
        %1202 = vmatpush.bf16.msra.mxu0 0
        %1203 = vmatpush.bf16.msra.mxu0 0
        %1204 = vmatpush.bf16.msra.mxu0 0
        %1205 = vmatpush.bf16.msra.mxu0 0
        %1206 = vmatpush.bf16.msra.mxu0 %v1193
        %1207 = vmatpush.bf16.msra.mxu0 %v1192
        %1208 = vmatpush.bf16.msra.mxu0 %v1191
        %1209 = vmatpush.bf16.msra.mxu0 %v1190
        %1210 = vmatmul.bf16.gmra.mxu0 %v1200
        %v1211 = vpop.f32.mrf.mxu0
        %v1212 = vadd.f32 %v1172, %v1211
        %v1213 = vpop.f32.mrf.mxu0
        %1214 = vdwg.mxu0
        %v1215 = vadd.f32 %v1212, %v1114
        %v1216 = vld [vmem:[%s15] sm:$0x1]
        %v1217 = vld [vmem:[%s16] sm:$0x1]
        %v1218 = vsel %vm665, %v1215, 0.0
        %1219 = vadd.xlane.f32.xlu0 %v1218
        %v1220 = vpop.xlane.xlu0 %1219
        %v1221 = vmul.f32 %v1220, %v675
        %v1222 = vsub.f32 %v1215, %v1221
        %v1223 = vmul.f32 %v1222, %v1222
        %v1224 = vsel %vm665, %v1223, 0.0
        %1225 = vadd.xlane.f32.xlu0 %v1224
        %v1226 = vpop.xlane.xlu0 %1225
        %v1227 = vmul.f32 %v1226, %v675
        %v1228 = vadd.f32 %v1227, 1e-12
        %v1229 = vrsqrt.pop %v1228
        %v1230 = vmul.f32 %v1229, %v1228
        %v1231 = vmul.f32 %v1230, %v1229
        %v1232 = vmul.f32 0.5, %v1231
        %v1233 = vsub.f32 1.5, %v1232
        %v1234 = vmul.f32 %v1229, %v1233
        %vm1235 = vweird.f32 %v1228
        %vm1236 = vweird.f32 %v1229
        %vm1237 = vmor %vm1235, %vm1236
        %v1238 = vsel %vm1237, %v1229, %v1234
        %v1239 = vmul.f32 %v1222, %v1238
        %v1241 = vperm.slane %v1216, 0
        %v1243 = vmul.f32 %v1239, %v1241
        %v1245 = vperm.slane %v1217, 0
        %v1247 = vadd.f32 %v1243, %v1245
        %s1248 = scalar_lea.vmem %s5, 96
        %v1249 = vld [vmem:[%s1248] sm:$0xf]
        %v1250 = vld [vmem:[%s1248 + $0x4] sm:$0xf]
        %v1251 = vld [vmem:[%s1248 + $0x8] sm:$0xf]
        %v1252 = vld [vmem:[%s1248 + $0xc] sm:$0xf]
        %v1253 = vld [vmem:[%s1248 + $0x10] sm:$0xf]
        %v1254 = vld [vmem:[%s1248 + $0x14] sm:$0xf]
        %v1255 = vld [vmem:[%s1248 + $0x18] sm:$0xf]
        %v1256 = vld [vmem:[%s1248 + $0x1c] sm:$0xf]
        %v1257 = vld [vmem:[%s1248 + $0x20] sm:$0xf]
        %v1258 = vld [vmem:[%s1248 + $0x24] sm:$0xf]
        %v1259 = vld [vmem:[%s1248 + $0x28] sm:$0xf]
        %v1260 = vld [vmem:[%s1248 + $0x2c] sm:$0xf]
        %v1261 = vld [vmem:[%s1248 + $0x30] sm:$0xf]
        %v1262 = vld [vmem:[%s1248 + $0x34] sm:$0xf]
        %v1263 = vld [vmem:[%s1248 + $0x38] sm:$0xf]
        %v1264 = vld [vmem:[%s1248 + $0x3c] sm:$0xf]
        %v1265 = vld [vmem:[%s1248 + $0x40] sm:$0xf]
        %v1266 = vld [vmem:[%s1248 + $0x44] sm:$0xf]
        %v1267 = vld [vmem:[%s1248 + $0x48] sm:$0xf]
        %v1268 = vld [vmem:[%s1248 + $0x4c] sm:$0xf]
        %v1269 = vld [vmem:[%s1248 + $0x50] sm:$0xf]
        %v1270 = vld [vmem:[%s1248 + $0x54] sm:$0xf]
        %v1271 = vld [vmem:[%s1248 + $0x58] sm:$0xf]
        %v1272 = vld [vmem:[%s1248 + $0x5c] sm:$0xf]
        %s1273 = scalar_lea.vmem %s6, 6
        %v1274 = vld [vmem:[%s1273] sm:$0x1]
        %v1275 = vld [vmem:[%s1273 + $0x1] sm:$0x1]
        %v1276 = vld [vmem:[%s1273 + $0x2] sm:$0x1]
        %v1277 = vld [vmem:[%s1273 + $0x3] sm:$0x1]
        %v1278 = vld [vmem:[%s1273 + $0x4] sm:$0x1]
        %v1279 = vld [vmem:[%s1273 + $0x5] sm:$0x1]
        %v1280 = vpack.c.bf16 %v1247, %v1247
        %v1283 = vperm.slane %v1274, 0
        %v1284 = vperm.slane %v1275, 0
        %v1291 = vunpack.c.l.b16 %v1249
        %v1292 = vunpack.c.l.b16 %v1250
        %v1293 = vunpack.c.l.b16 %v1251
        %v1294 = vunpack.c.l.b16 %v1252
        %v1295 = vpack.c.b16 %v1292, %v1291
        %v1296 = vpack.c.b16 %v1294, %v1293
        %v1300 = vsel %vm665, %v1280, 0
        %1302 = vmatpush.bf16.msra.mxu0 0
        %1303 = vmatpush.bf16.msra.mxu0 0
        %1304 = vmatpush.bf16.msra.mxu0 0
        %1305 = vmatpush.bf16.msra.mxu0 0
        %1306 = vmatpush.bf16.msra.mxu0 0
        %1307 = vmatpush.bf16.msra.mxu0 0
        %1308 = vmatpush.bf16.msra.mxu0 %v1296
        %1309 = vmatpush.bf16.msra.mxu0 %v1295
        %1310 = vmatmul.bf16.gmra.mxu0 %v1300
        %v1311 = vpop.f32.mrf.mxu0
        %v1312 = vadd.f32 %v1283, %v1311
        %v1313 = vpop.f32.mrf.mxu0
        %1314 = vdwg.mxu0
        %v1319 = vunpack.c.l.b16 %v1253
        %v1320 = vunpack.c.l.b16 %v1254
        %v1321 = vunpack.c.l.b16 %v1255
        %v1322 = vunpack.c.l.b16 %v1256
        %v1323 = vpack.c.b16 %v1320, %v1319
        %v1324 = vpack.c.b16 %v1322, %v1321
        %1327 = vmatpush.bf16.msra.mxu0 0
        %1328 = vmatpush.bf16.msra.mxu0 0
        %1329 = vmatpush.bf16.msra.mxu0 0
        %1330 = vmatpush.bf16.msra.mxu0 0
        %1331 = vmatpush.bf16.msra.mxu0 0
        %1332 = vmatpush.bf16.msra.mxu0 0
        %1333 = vmatpush.bf16.msra.mxu0 %v1324
        %1334 = vmatpush.bf16.msra.mxu0 %v1323
        %1335 = vmatmul.bf16.gmra.mxu0 %v1300
        %v1336 = vpop.f32.mrf.mxu0
        %v1337 = vadd.f32 %v1284, %v1336
        %v1338 = vpop.f32.mrf.mxu0
        %1339 = vdwg.mxu0
        %v1342 = vperm.slane %v1276, 0
        %v1343 = vperm.slane %v1277, 0
        %v1350 = vunpack.c.l.b16 %v1257
        %v1351 = vunpack.c.l.b16 %v1258
        %v1352 = vunpack.c.l.b16 %v1259
        %v1353 = vunpack.c.l.b16 %v1260
        %v1354 = vpack.c.b16 %v1351, %v1350
        %v1355 = vpack.c.b16 %v1353, %v1352
        %1358 = vmatpush.bf16.msra.mxu0 0
        %1359 = vmatpush.bf16.msra.mxu0 0
        %1360 = vmatpush.bf16.msra.mxu0 0
        %1361 = vmatpush.bf16.msra.mxu0 0
        %1362 = vmatpush.bf16.msra.mxu0 0
        %1363 = vmatpush.bf16.msra.mxu0 0
        %1364 = vmatpush.bf16.msra.mxu0 %v1355
        %1365 = vmatpush.bf16.msra.mxu0 %v1354
        %1366 = vmatmul.bf16.gmra.mxu0 %v1300
        %v1367 = vpop.f32.mrf.mxu0
        %v1368 = vadd.f32 %v1342, %v1367
        %v1369 = vpop.f32.mrf.mxu0
        %1370 = vdwg.mxu0
        %v1375 = vunpack.c.l.b16 %v1261
        %v1376 = vunpack.c.l.b16 %v1262
        %v1377 = vunpack.c.l.b16 %v1263
        %v1378 = vunpack.c.l.b16 %v1264
        %v1379 = vpack.c.b16 %v1376, %v1375
        %v1380 = vpack.c.b16 %v1378, %v1377
        %1383 = vmatpush.bf16.msra.mxu0 0
        %1384 = vmatpush.bf16.msra.mxu0 0
        %1385 = vmatpush.bf16.msra.mxu0 0
        %1386 = vmatpush.bf16.msra.mxu0 0
        %1387 = vmatpush.bf16.msra.mxu0 0
        %1388 = vmatpush.bf16.msra.mxu0 0
        %1389 = vmatpush.bf16.msra.mxu0 %v1380
        %1390 = vmatpush.bf16.msra.mxu0 %v1379
        %1391 = vmatmul.bf16.gmra.mxu0 %v1300
        %v1392 = vpop.f32.mrf.mxu0
        %v1393 = vadd.f32 %v1343, %v1392
        %v1394 = vpop.f32.mrf.mxu0
        %1395 = vdwg.mxu0
        %v1398 = vperm.slane %v1278, 0
        %v1399 = vperm.slane %v1279, 0
        %v1406 = vunpack.c.l.b16 %v1265
        %v1407 = vunpack.c.l.b16 %v1266
        %v1408 = vunpack.c.l.b16 %v1267
        %v1409 = vunpack.c.l.b16 %v1268
        %v1410 = vpack.c.b16 %v1407, %v1406
        %v1411 = vpack.c.b16 %v1409, %v1408
        %1414 = vmatpush.bf16.msra.mxu0 0
        %1415 = vmatpush.bf16.msra.mxu0 0
        %1416 = vmatpush.bf16.msra.mxu0 0
        %1417 = vmatpush.bf16.msra.mxu0 0
        %1418 = vmatpush.bf16.msra.mxu0 0
        %1419 = vmatpush.bf16.msra.mxu0 0
        %1420 = vmatpush.bf16.msra.mxu0 %v1411
        %1421 = vmatpush.bf16.msra.mxu0 %v1410
        %1422 = vmatmul.bf16.gmra.mxu0 %v1300
        %v1423 = vpop.f32.mrf.mxu0
        %v1424 = vadd.f32 %v1398, %v1423
        %v1425 = vpop.f32.mrf.mxu0
        %1426 = vdwg.mxu0
        %v1431 = vunpack.c.l.b16 %v1269
        %v1432 = vunpack.c.l.b16 %v1270
        %v1433 = vunpack.c.l.b16 %v1271
        %v1434 = vunpack.c.l.b16 %v1272
        %v1435 = vpack.c.b16 %v1432, %v1431
        %v1436 = vpack.c.b16 %v1434, %v1433
        %1439 = vmatpush.bf16.msra.mxu0 0
        %1440 = vmatpush.bf16.msra.mxu0 0
        %1441 = vmatpush.bf16.msra.mxu0 0
        %1442 = vmatpush.bf16.msra.mxu0 0
        %1443 = vmatpush.bf16.msra.mxu0 0
        %1444 = vmatpush.bf16.msra.mxu0 0
        %1445 = vmatpush.bf16.msra.mxu0 %v1436
        %1446 = vmatpush.bf16.msra.mxu0 %v1435
        %1447 = vmatmul.bf16.gmra.mxu0 %v1300
        %v1448 = vpop.f32.mrf.mxu0
        %v1449 = vadd.f32 %v1399, %v1448
        %v1450 = vpop.f32.mrf.mxu0
        %1451 = vdwg.mxu0
        %v1452 = vpack.c.bf16 %v1312, %v1312
        %v1453 = vpack.c.bf16 %v1337, %v1337
        %v1454 = vpack.c.bf16 %v1368, %v1368
        %v1455 = vpack.c.bf16 %v1393, %v1393
        %v1457 = vsel %vm912, %v1452, 0
        %v1460 = vsel %vm912, %v1454, 0
        %1462 = vmatpush.bf16.xpose.msra.mxu0 0
        %1463 = vmatpush.bf16.xpose.msra.mxu0 0
        %1464 = vmatpush.bf16.xpose.msra.mxu0 0
        %1465 = vmatpush.bf16.xpose.msra.mxu0 0
        %1466 = vmatpush.bf16.xpose.msra.mxu0 0
        %1467 = vmatpush.bf16.xpose.msra.mxu0 0
        %1468 = vmatpush.bf16.xpose.msra.mxu0 0
        %1469 = vmatpush.bf16.xpose.msra.mxu0 %v1460
        %1470 = vmatmul.bf16.gmra.mxu0 %v1457
        %v1471 = vpop.f32.mrf.mxu0
        %v1472 = vadd.f32 0.0, %v1471
        %v1473 = vpop.f32.mrf.mxu0
        %1474 = vdwg.mxu0
        %v1476 = vsel %vm912, %v1453, 0
        %v1479 = vsel %vm912, %v1455, 0
        %1481 = vmatpush.bf16.xpose.msra.mxu0 0
        %1482 = vmatpush.bf16.xpose.msra.mxu0 0
        %1483 = vmatpush.bf16.xpose.msra.mxu0 0
        %1484 = vmatpush.bf16.xpose.msra.mxu0 0
        %1485 = vmatpush.bf16.xpose.msra.mxu0 0
        %1486 = vmatpush.bf16.xpose.msra.mxu0 0
        %1487 = vmatpush.bf16.xpose.msra.mxu0 0
        %1488 = vmatpush.bf16.xpose.msra.mxu0 %v1479
        %1489 = vmatmul.bf16.gmra.mxu0 %v1476
        %v1490 = vpop.f32.mrf.mxu0
        %v1491 = vadd.f32 0.0, %v1490
        %v1492 = vpop.f32.mrf.mxu0
        %1493 = vdwg.mxu0
        %v1494 = vmul.f32 %v1472, 0.25
        %v1495 = vmul.f32 %v1491, 0.25
        %v1496 = vadd.f32 %v1494, %v954
        %v1497 = vadd.f32 %v1495, %v954
        %v1498 = vsel %vm958, %v1496, -inf
        %1499 = vmax.xlane.f32.xlu0 %v1498
        %v1500 = vpop.xlane.xlu0 %1499
        %v1501 = vsel %vm958, %v1497, -inf
        %1502 = vmax.xlane.f32.xlu0 %v1501
        %v1503 = vpop.xlane.xlu0 %1502
        %v1504 = vsub.f32 %v1496, %v1500
        %v1505 = vsub.f32 %v1497, %v1503
        %v1506 = vmul.f32 %v1504, 1.442695
        %v1507 = vpow.pop %v1506
        %v1508 = vmul.f32 %v1505, 1.442695
        %v1509 = vpow.pop %v1508
        %v1510 = vsel %vm958, %v1507, 0.0
        %1511 = vadd.xlane.f32.xlu0 %v1510
        %v1512 = vpop.xlane.xlu0 %1511
        %v1513 = vsel %vm958, %v1509, 0.0
        %1514 = vadd.xlane.f32.xlu0 %v1513
        %v1515 = vpop.xlane.xlu0 %1514
        %v1516 = vrcp.pop %v1512
        %v1517 = vrcp.pop %v1515
        %v1518 = vmul.f32 %v1507, %v1516
        %v1519 = vmul.f32 %v1509, %v1517
        %v1520 = vpack.c.bf16 %v1518, %v1518
        %v1521 = vpack.c.bf16 %v1519, %v1519
        %v1522 = vpack.c.bf16 %v1424, %v1424
        %v1523 = vpack.c.bf16 %v1449, %v1449
        %v1525 = vsel %vm958, %v1520, 0
        %v1528 = vsel %vm988, %v1522, 0
        %1530 = vmatpush.bf16.msra.mxu0 0
        %1531 = vmatpush.bf16.msra.mxu0 0
        %1532 = vmatpush.bf16.msra.mxu0 0
        %1533 = vmatpush.bf16.msra.mxu0 0
        %1534 = vmatpush.bf16.msra.mxu0 0
        %1535 = vmatpush.bf16.msra.mxu0 0
        %1536 = vmatpush.bf16.msra.mxu0 0
        %1537 = vmatpush.bf16.msra.mxu0 %v1528
        %1538 = vmatmul.bf16.gmra.mxu0 %v1525
        %v1539 = vpop.f32.mrf.mxu0
        %v1540 = vadd.f32 0.0, %v1539
        %v1541 = vpop.f32.mrf.mxu0
        %1542 = vdwg.mxu0
        %v1544 = vsel %vm958, %v1521, 0
        %v1547 = vsel %vm988, %v1523, 0
        %1549 = vmatpush.bf16.msra.mxu0 0
        %1550 = vmatpush.bf16.msra.mxu0 0
        %1551 = vmatpush.bf16.msra.mxu0 0
        %1552 = vmatpush.bf16.msra.mxu0 0
        %1553 = vmatpush.bf16.msra.mxu0 0
        %1554 = vmatpush.bf16.msra.mxu0 0
        %1555 = vmatpush.bf16.msra.mxu0 0
        %1556 = vmatpush.bf16.msra.mxu0 %v1547
        %1557 = vmatmul.bf16.gmra.mxu0 %v1544
        %v1558 = vpop.f32.mrf.mxu0
        %v1559 = vadd.f32 0.0, %v1558
        %v1560 = vpop.f32.mrf.mxu0
        %1561 = vdwg.mxu0
        %v1562 = vpack.c.bf16 %v1540, %v1540
        %v1563 = vpack.c.bf16 %v1559, %v1559
        %s1564 = scalar_lea.vmem %s7, 16
        %v1565 = vld [vmem:[%s1564] sm:$0xf]
        %v1566 = vld [vmem:[%s1564 + $0x4] sm:$0xf]
        %v1567 = vld [vmem:[%s1564 + $0x8] sm:$0xf]
        %v1568 = vld [vmem:[%s1564 + $0xc] sm:$0xf]
        %v1571 = vunpack.c.l.b16 %v1565
        %v1572 = vunpack.c.l.b16 %v1566
        %v1573 = vpack.c.b16 %v1572, %v1571
        %v1576 = vsel %vm912, %v1562, 0
        %1578 = vmatpush.bf16.msra.mxu0 0
        %1579 = vmatpush.bf16.msra.mxu0 0
        %1580 = vmatpush.bf16.msra.mxu0 0
        %1581 = vmatpush.bf16.msra.mxu0 0
        %1582 = vmatpush.bf16.msra.mxu0 0
        %1583 = vmatpush.bf16.msra.mxu0 0
        %1584 = vmatpush.bf16.msra.mxu0 0
        %1585 = vmatpush.bf16.msra.mxu0 %v1573
        %1586 = vmatmul.bf16.gmra.mxu0 %v1576
        %v1587 = vpop.f32.mrf.mxu0
        %v1588 = vadd.f32 0.0, %v1587
        %v1589 = vpop.f32.mrf.mxu0
        %1590 = vdwg.mxu0
        %v1593 = vunpack.c.l.b16 %v1567
        %v1594 = vunpack.c.l.b16 %v1568
        %v1595 = vpack.c.b16 %v1594, %v1593
        %v1598 = vsel %vm912, %v1563, 0
        %1600 = vmatpush.bf16.msra.mxu0 0
        %1601 = vmatpush.bf16.msra.mxu0 0
        %1602 = vmatpush.bf16.msra.mxu0 0
        %1603 = vmatpush.bf16.msra.mxu0 0
        %1604 = vmatpush.bf16.msra.mxu0 0
        %1605 = vmatpush.bf16.msra.mxu0 0
        %1606 = vmatpush.bf16.msra.mxu0 0
        %1607 = vmatpush.bf16.msra.mxu0 %v1595
        %1608 = vmatmul.bf16.gmra.mxu0 %v1598
        %v1609 = vpop.f32.mrf.mxu0
        %v1610 = vadd.f32 0.0, %v1609
        %v1611 = vpop.f32.mrf.mxu0
        %1612 = vdwg.mxu0
        %v1613 = vsel %vm665, %v1588, 0.0
        %v1614 = vsel %vm665, %v1610, 0.0
        %v1615 = vadd.f32 %v1613, %v1614
        %s1616 = scalar_lea.vmem %s8, 1
        %v1617 = vld [vmem:[%s1616] sm:$0x1]
        %v1619 = vperm.slane %v1617, 0
        %v1621 = vadd.f32 %v1615, %v1619
        %v1622 = vadd.f32 %v1621, %v1247
        %s1623 = scalar_lea.vmem %s9, 1
        %v1624 = vld [vmem:[%s1623] sm:$0x1]
        %s1625 = scalar_lea.vmem %s10, 1
        %v1626 = vld [vmem:[%s1625] sm:$0x1]
        %v1627 = vsel %vm665, %v1622, 0.0
        %1628 = vadd.xlane.f32.xlu0 %v1627
        %v1629 = vpop.xlane.xlu0 %1628
        %v1630 = vmul.f32 %v1629, %v675
        %v1631 = vsub.f32 %v1622, %v1630
        %v1632 = vmul.f32 %v1631, %v1631
        %v1633 = vsel %vm665, %v1632, 0.0
        %1634 = vadd.xlane.f32.xlu0 %v1633
        %v1635 = vpop.xlane.xlu0 %1634
        %v1636 = vmul.f32 %v1635, %v675
        %v1637 = vadd.f32 %v1636, 1e-12
        %v1638 = vrsqrt.pop %v1637
        %v1639 = vmul.f32 %v1638, %v1637
        %v1640 = vmul.f32 %v1639, %v1638
        %v1641 = vmul.f32 0.5, %v1640
        %v1642 = vsub.f32 1.5, %v1641
        %v1643 = vmul.f32 %v1638, %v1642
        %vm1644 = vweird.f32 %v1637
        %vm1645 = vweird.f32 %v1638
        %vm1646 = vmor %vm1644, %vm1645
        %v1647 = vsel %vm1646, %v1638, %v1643
        %v1648 = vmul.f32 %v1631, %v1647
        %v1650 = vperm.slane %v1624, 0
        %v1652 = vmul.f32 %v1648, %v1650
        %v1654 = vperm.slane %v1626, 0
        %v1656 = vadd.f32 %v1652, %v1654
        %v1657 = vpack.c.bf16 %v1656, %v1656
        %s1658 = scalar_lea.vmem %s11, 16
        %v1659 = vld [vmem:[%s1658] sm:$0xf]
        %v1660 = vld [vmem:[%s1658 + $0x4] sm:$0xf]
        %v1661 = vld [vmem:[%s1658 + $0x8] sm:$0xf]
        %v1662 = vld [vmem:[%s1658 + $0xc] sm:$0xf]
        %s1663 = scalar_lea.vmem %s12, 1
        %v1664 = vld [vmem:[%s1663] sm:$0x1]
        %v1666 = vperm.slane %v1664, 0
        %v1672 = vunpack.c.l.b16 %v1659
        %v1673 = vunpack.c.l.b16 %v1660
        %v1674 = vunpack.c.l.b16 %v1661
        %v1675 = vunpack.c.l.b16 %v1662
        %v1676 = vpack.c.b16 %v1673, %v1672
        %v1677 = vpack.c.b16 %v1675, %v1674
        %v1681 = vsel %vm665, %v1657, 0
        %1683 = vmatpush.bf16.msra.mxu0 0
        %1684 = vmatpush.bf16.msra.mxu0 0
        %1685 = vmatpush.bf16.msra.mxu0 0
        %1686 = vmatpush.bf16.msra.mxu0 0
        %1687 = vmatpush.bf16.msra.mxu0 0
        %1688 = vmatpush.bf16.msra.mxu0 0
        %1689 = vmatpush.bf16.msra.mxu0 %v1677
        %1690 = vmatpush.bf16.msra.mxu0 %v1676
        %1691 = vmatmul.bf16.gmra.mxu0 %v1681
        %v1692 = vpop.f32.mrf.mxu0
        %v1693 = vadd.f32 %v1666, %v1692
        %v1694 = vpop.f32.mrf.mxu0
        %1695 = vdwg.mxu0
        %v1696 = vmul.f32 %v1693, 0.5
        %v1697 = vmul.f32 %v1693, 0.044715
        %v1698 = vmul.f32 %v1697, %v1693
        %v1699 = vmul.f32 %v1698, %v1693
        %v1700 = vadd.f32 %v1693, %v1699
        %v1701 = vmul.f32 %v1700, 0.7978846
        %v1702 = vtanh.pop %v1701
        %v1703 = vadd.f32 %v1702, 1.0
        %v1704 = vmul.f32 %v1696, %v1703
        %v1705 = vpack.c.bf16 %v1704, %v1704
        %s1706 = scalar_lea.vmem %s13, 32
        %v1707 = vld [vmem:[%s1706] sm:$0xf]
        %v1708 = vld [vmem:[%s1706 + $0x4] sm:$0xf]
        %v1709 = vld [vmem:[%s1706 + $0x8] sm:$0xf]
        %v1710 = vld [vmem:[%s1706 + $0xc] sm:$0xf]
        %v1711 = vld [vmem:[%s1706 + $0x10] sm:$0xf]
        %v1712 = vld [vmem:[%s1706 + $0x14] sm:$0xf]
        %v1713 = vld [vmem:[%s1706 + $0x18] sm:$0xf]
        %v1714 = vld [vmem:[%s1706 + $0x1c] sm:$0xf]
        %s1715 = scalar_lea.vmem %s14, 1
        %v1716 = vld [vmem:[%s1715] sm:$0x1]
        %v1718 = vperm.slane %v1716, 0
        %v1728 = vunpack.c.l.b16 %v1707
        %v1729 = vunpack.c.l.b16 %v1708
        %v1730 = vunpack.c.l.b16 %v1709
        %v1731 = vunpack.c.l.b16 %v1710
        %v1732 = vunpack.c.l.b16 %v1711
        %v1733 = vunpack.c.l.b16 %v1712
        %v1734 = vunpack.c.l.b16 %v1713
        %v1735 = vunpack.c.l.b16 %v1714
        %v1736 = vpack.c.b16 %v1729, %v1728
        %v1737 = vpack.c.b16 %v1731, %v1730
        %v1738 = vpack.c.b16 %v1733, %v1732
        %v1739 = vpack.c.b16 %v1735, %v1734
        %v1745 = vsel %vm1198, %v1705, 0
        %1747 = vmatpush.bf16.msra.mxu0 0
        %1748 = vmatpush.bf16.msra.mxu0 0
        %1749 = vmatpush.bf16.msra.mxu0 0
        %1750 = vmatpush.bf16.msra.mxu0 0
        %1751 = vmatpush.bf16.msra.mxu0 %v1739
        %1752 = vmatpush.bf16.msra.mxu0 %v1738
        %1753 = vmatpush.bf16.msra.mxu0 %v1737
        %1754 = vmatpush.bf16.msra.mxu0 %v1736
        %1755 = vmatmul.bf16.gmra.mxu0 %v1745
        %v1756 = vpop.f32.mrf.mxu0
        %v1757 = vadd.f32 %v1718, %v1756
        %v1758 = vpop.f32.mrf.mxu0
        %1759 = vdwg.mxu0
        %v1760 = vadd.f32 %v1757, %v1656
        %s1761 = scalar_lea.vmem %s15, 1
        %v1762 = vld [vmem:[%s1761] sm:$0x1]
        %s1763 = scalar_lea.vmem %s16, 1
        %v1764 = vld [vmem:[%s1763] sm:$0x1]
        %v1765 = vsel %vm665, %v1760, 0.0
        %1766 = vadd.xlane.f32.xlu0 %v1765
        %v1767 = vpop.xlane.xlu0 %1766
        %v1768 = vmul.f32 %v1767, %v675
        %v1769 = vsub.f32 %v1760, %v1768
        %v1770 = vmul.f32 %v1769, %v1769
        %v1771 = vsel %vm665, %v1770, 0.0
        %1772 = vadd.xlane.f32.xlu0 %v1771
        %v1773 = vpop.xlane.xlu0 %1772
        %v1774 = vmul.f32 %v1773, %v675
        %v1775 = vadd.f32 %v1774, 1e-12
        %v1776 = vrsqrt.pop %v1775
        %v1777 = vmul.f32 %v1776, %v1775
        %v1778 = vmul.f32 %v1777, %v1776
        %v1779 = vmul.f32 0.5, %v1778
        %v1780 = vsub.f32 1.5, %v1779
        %v1781 = vmul.f32 %v1776, %v1780
        %vm1782 = vweird.f32 %v1775
        %vm1783 = vweird.f32 %v1776
        %vm1784 = vmor %vm1782, %vm1783
        %v1785 = vsel %vm1784, %v1776, %v1781
        %v1786 = vmul.f32 %v1769, %v1785
        %v1788 = vperm.slane %v1762, 0
        %v1790 = vmul.f32 %v1786, %v1788
        %v1792 = vperm.slane %v1764, 0
        %v1794 = vadd.f32 %v1790, %v1792
        %v1795 = vpack.c.bf16 %v1794, %v1794
        %v1796 = vld [vmem:[%s17] sm:$0xf]
        %v1797 = vld [vmem:[%s17 + $0x4] sm:$0xf]
        %v1798 = vld [vmem:[%s17 + $0x8] sm:$0xf]
        %v1799 = vld [vmem:[%s17 + $0xc] sm:$0xf]
        %v1800 = vld [vmem:[%s18] sm:$0x1]
        %v1805 = vunpack.c.l.b16 %v1796
        %v1806 = vunpack.c.l.b16 %v1797
        %v1807 = vunpack.c.l.b16 %v1798
        %v1808 = vunpack.c.l.b16 %v1799
        %v1809 = vpack.c.b16 %v1806, %v1805
        %v1810 = vpack.c.b16 %v1808, %v1807
        %v1814 = vsel %vm665, %v1795, 0
        %1816 = vmatpush.bf16.msra.mxu0 0
        %1817 = vmatpush.bf16.msra.mxu0 0
        %1818 = vmatpush.bf16.msra.mxu0 0
        %1819 = vmatpush.bf16.msra.mxu0 0
        %1820 = vmatpush.bf16.msra.mxu0 0
        %1821 = vmatpush.bf16.msra.mxu0 0
        %1822 = vmatpush.bf16.msra.mxu0 %v1810
        %1823 = vmatpush.bf16.msra.mxu0 %v1809
        %1824 = vmatmul.bf16.gmra.mxu0 %v1814
        %v1825 = vpop.f32.mrf.mxu0
        %v1826 = vadd.f32 %v1800, %v1825
        %v1827 = vpop.f32.mrf.mxu0
        %1828 = vdwg.mxu0
        %1829 = vst [vmem:[%s642] sm:$0x1] %v1826
        %v1830 = vld [vmem:[%s657] sm:$0x1]
        %v1831 = vmax.f32 %v1826, 0.0
        %v1832 = vmul.f32 %v1826, %v1830
        %v1833 = vsub.f32 %v1831, %v1832
        %v1834 = vand.u32 2147483647, %v1826
        %v1835 = vsub.f32 0.0, %v1834
        %v1836 = vmul.f32 %v1835, 1.442695
        %v1837 = vpow.pop %v1836
        %v1838 = vadd.f32 %v1837, 1.0
        %v1839 = vlog2.pop %v1838
        %v1840 = vmul.f32 %v1839, 0.6931472
        %v1841 = vadd.f32 %v1833, %v1840
        %v1842 = vlaneseq
        %v1843 = vand.u32 %v1842, 127
        %vm1844 = vcmp.lt.s32.totalorder %v1843, 4
        %v1845 = vsel %vm1844, %v1841, 0.0
        %vm1846 = vcmask 1040384
        %v1847 = vsel %vm1846, %v1845, 0.0
        %1848 = vadd.xlane.f32.xlu0 %v1847
        %v1849 = vpop.xlane.xlu0 %1848
        %vm1850 = vcmask 0
        %1851 = vst.msk [vmem:[%s660] sm:$0x1] %vm1850, %v1849
        %s1852 = sand.u32 %s457, 1
        %s1853 = scalar_lea.sflag [#allocation3], %s1852
        %s1854 = sand.u32 %s457, 1
        %s1855 = scalar_lea.vmem [#allocation2], %s1854
        %p1856 = scmp.lt.s32.totalorder %s35, 1
        %s1857 = scalar_select %p1856, %s35, 1
        %s1858 = scalar_lea.vmem %s20, %s1857
        // Predicated region
        $region97: #{tpu_custom_call.1} parent=95 // pred_check
          %p1859 = pneg %p467
        $region98: #{tpu_custom_call.1} parent=95 // pred_check_branch
          %1861 = sbr.rel (%p1859) target = $region100
        $region99: #{tpu_custom_call.1} parent=95 // pred_region
          %1863 = vsyncadd %s1853, 0
          %s1864 = scalar_lea.hbm %s19, %s35
          %s1866 = sshll.u32 %s1855, 4
          %s1867 = int_to_ptr.vmem [resolvable:$true] %s1866
          %s1868 = sshll.u32 %s1864, 4
          %s1869 = int_to_ptr.hbm [resolvable:$true] %s1868
          %1871 = dma.vmem_to_hbm [thread:$0]  %s1867, 16, %s1869, %s1853
        $region100: #{tpu_custom_call.1} parent=95 // pred_fallthru
          _
        // Predicated region
        $region101: #{tpu_custom_call.1} parent=95 // pred_check
          %p1872 = pneg %p493
        $region102: #{tpu_custom_call.1} parent=95 // pred_check_branch
          %1874 = sbr.rel (%p1872) target = $region104
        $region103: #{tpu_custom_call.1} parent=95 // pred_region
          _
        $region104: #{tpu_custom_call.1} parent=95 // pred_fallthru
          _
      $region96: #{tpu_custom_call.1} parent=5 // pred_fallthru
        _
      %p1875 = scmp.le.s32.totalorder 2, %s30
      // Predicated region
      $region105: #{tpu_custom_call.1} parent=5 // pred_check
        %p1876 = pneg %p1875
      $region106: #{tpu_custom_call.1} parent=5 // pred_check_branch
        %1878 = sbr.rel (%p1876) target = $region108
      $region107: #{tpu_custom_call.1} parent=5 // pred_region
        %s1879 = ssub.s32 %s30, 2
        // Predicated region
        $region109: #{tpu_custom_call.1} parent=107 // pred_check
          %p1880 = pneg %p473
        $region110: #{tpu_custom_call.1} parent=107 // pred_check_branch
          %1882 = sbr.rel (%p1880) target = $region112
        $region111: #{tpu_custom_call.1} parent=107 // pred_region
          %s1883 = sand.u32 %s458, 1
          %s1884 = scalar_lea.sflag [#allocation3], %s1883
          %s1885 = sand.u32 %s458, 1
          %s1886 = scalar_lea.vmem [#allocation2], %s1885
          %1888 = dma.done %s1884, 16
        $region112: #{tpu_custom_call.1} parent=107 // pred_fallthru
          _
        // Predicated region
        $region113: #{tpu_custom_call.1} parent=107 // pred_check
          %p1889 = pneg %p499
        $region114: #{tpu_custom_call.1} parent=107 // pred_check_branch
          %1891 = sbr.rel (%p1889) target = $region116
        $region115: #{tpu_custom_call.1} parent=107 // pred_region
          %p1892 = scmp.lt.s32.totalorder %s36, 1
          %s1893 = scalar_select %p1892, %s36, 1
          %s1894 = scalar_lea.vmem %s20, %s1893
        $region116: #{tpu_custom_call.1} parent=107 // pred_fallthru
          _
      $region108: #{tpu_custom_call.1} parent=5 // pred_fallthru
        _
    $region6: #{tpu_custom_call.1} parent=1 // loop_footer
      %s34 = sadd.s32 1, %s30
    $region7: #{tpu_custom_call.1} parent=1 // loop_footer_branch
      %29 = sbr.rel target = $region3
    $region8: #{tpu_custom_call.1} parent=1 // loop_exit
      _
    %1895 = vsyncpa [#allocation3], 1
    %s1896 = scalar_lea.sflag [#allocation3], 1
    %1897 = vsyncpa %s1896, 1

</llo_original>
